<compile_context>
chip_gen: v6e
topology: v6e:2x2x1
jax: 0.10.0
libtpu: 0.0.40
codegen_flags: <defaults>
</compile_context>

<pallas_src>
import functools

import jax
import jax.numpy as jnp
import numpy as np
from jax.experimental import pallas as pl
from jax.experimental.pallas import tpu as pltpu


def _mha_kernel(q_ref, k_ref, v_ref,
                wq_ref, bq_ref, wk_ref, bk_ref, wv_ref, bv_ref,
                wo_ref, bo_ref,
                o_ref,
                attn_scr,
                *, num_heads):
    Bb, Lq, E = q_ref.shape
    Lk = k_ref.shape[1]
    hd = E // num_heads

    # Fold the batch block into the matmul M dimension; bf16 operands for the MXU,
    # f32 accumulation via preferred_element_type.
    xq = q_ref[...].reshape(Bb * Lq, E).astype(jnp.bfloat16)
    xk = k_ref[...].reshape(Bb * Lk, E).astype(jnp.bfloat16)
    xv = v_ref[...].reshape(Bb * Lk, E).astype(jnp.bfloat16)

    # Weights arrive pre-transposed to (in, out) layout and already in bf16; the
    # 1/sqrt(head_dim) scaling is folded into wq/bq by the wrapper.
    q = jnp.dot(xq, wq_ref[...], preferred_element_type=jnp.float32) + bq_ref[...]
    k = jnp.dot(xk, wk_ref[...], preferred_element_type=jnp.float32) + bk_ref[...]
    v = jnp.dot(xv, wv_ref[...], preferred_element_type=jnp.float32) + bv_ref[...]

    qb = q.astype(jnp.bfloat16)
    kb = k.astype(jnp.bfloat16)
    vb = v.astype(jnp.bfloat16)

    # Attention per (batch element, head): static slices, scores/softmax in f32,
    # head outputs written straight into the (Bb*Lq, E) VMEM scratch view
    # (no lane-axis concatenate).
    dn = (((1,), (1,)), ((), ()))   # q @ k^T without materializing a transpose
    for b in range(Bb):
        qr = slice(b * Lq, (b + 1) * Lq)
        kr = slice(b * Lk, (b + 1) * Lk)
        for h in range(num_heads):
            c = slice(h * hd, (h + 1) * hd)
            qh = qb[qr, c]                                   # (Lq, hd) bf16
            kh = kb[kr, c]                                   # (Lk, hd) bf16
            vh = vb[kr, c]                                   # (Lk, hd) bf16
            s = jax.lax.dot_general(qh, kh, dn,
                                    preferred_element_type=jnp.float32)  # (Lq, Lk)
            s = s - jnp.max(s, axis=-1, keepdims=True)
            p = jnp.exp(s)
            p = p * pl.reciprocal(jnp.sum(p, axis=-1, keepdims=True), approx=True)
            attn_scr[qr, c] = jnp.dot(p.astype(jnp.bfloat16), vh,
                                      preferred_element_type=jnp.float32)

    out = (jnp.dot(attn_scr[...].astype(jnp.bfloat16), wo_ref[...],
                   preferred_element_type=jnp.float32) + bo_ref[...])   # (Bb*Lq, E)
    o_ref[...] = out.reshape(Bb, Lq, E).astype(o_ref.dtype)


def _pick_block_b(B, Lq, Lk, E, num_heads):
    """Batch block: keep per-step VMEM modest, bound the static head-loop unroll,
    and (when B >= 2) leave at least two grid steps for the two v7x TensorCores."""
    per_elem = 4 * (3 * Lq * E + 2 * Lk * E + Lq * Lk + 2 * Lq * E)   # ~f32 bytes
    cap = max(1, (4 * 1024 * 1024) // max(per_elem, 1))               # ~4 MiB budget
    cap = min(cap, max(1, 32 // max(num_heads, 1)))                   # bound unroll
    if B >= 2:
        cap = min(cap, B // 2)
    bb = max(1, min(B, cap))
    while B % bb:
        bb -= 1
    return bb


def multihead_attention_pallas(query, key, value, params, num_heads,
                               *, block_b=None, vmem_limit_bytes=None):
    """query/key/value: (seq, batch, embed) float32, PyTorch MHA convention."""
    Lq, B, E = query.shape
    Lk = key.shape[0]
    assert E % num_heads == 0
    hd = E // num_heads
    scaling = float(hd) ** -0.5

    # Batch-major so grid blocks keep full (L, E) minor dims (always satisfies the
    # (8,128)/full-dim BlockSpec constraint, for any L / E / block_b).
    q_b = jnp.transpose(query, (1, 0, 2))
    k_b = jnp.transpose(key, (1, 0, 2))
    v_b = jnp.transpose(value, (1, 0, 2))

    wq, bq = params["q_proj"]
    wk, bk = params["k_proj"]
    wv, bv = params["v_proj"]
    wo, bo = params["out_proj"]

    # Pre-transpose to (in, out) layout, fold the softmax scaling into the q
    # projection, and cast weights to bf16 (f32 accumulation happens in-kernel).
    wq_t = (wq * scaling).T.astype(jnp.bfloat16)
    wk_t = wk.T.astype(jnp.bfloat16)
    wv_t = wv.T.astype(jnp.bfloat16)
    wo_t = wo.T.astype(jnp.bfloat16)
    bq_s = (bq * scaling).reshape(1, E).astype(jnp.float32)
    bk_r = bk.reshape(1, E).astype(jnp.float32)
    bv_r = bv.reshape(1, E).astype(jnp.float32)
    bo_r = bo.reshape(1, E).astype(jnp.float32)

    if block_b is None:
        block_b = _pick_block_b(B, Lq, Lk, E, num_heads)
    assert B % block_b == 0

    kernel = functools.partial(_mha_kernel, num_heads=num_heads)

    per_b = lambda i: (i, 0, 0)
    w2d = lambda i: (0, 0)

    cp_kwargs = dict(dimension_semantics=("parallel",))
    if vmem_limit_bytes is not None:
        # For large embed_dim / long sequences raise this explicitly (keep headroom:
        # 128 MiB physical VMEM on v5e/v6e, 64 MiB on v7x).
        cp_kwargs["vmem_limit_bytes"] = vmem_limit_bytes

    out_b = pl.pallas_call(
        kernel,
        out_shape=jax.ShapeDtypeStruct((B, Lq, E), jnp.float32),
        grid_spec=pltpu.PrefetchScalarGridSpec(
            num_scalar_prefetch=0,
            grid=(B // block_b,),
            in_specs=[
                pl.BlockSpec((block_b, Lq, E), per_b),   # query
                pl.BlockSpec((block_b, Lk, E), per_b),   # key
                pl.BlockSpec((block_b, Lk, E), per_b),   # value
                pl.BlockSpec((E, E), w2d),               # wq^T * scaling (bf16)
                pl.BlockSpec((1, E), w2d),               # bq * scaling
                pl.BlockSpec((E, E), w2d),               # wk^T (bf16)
                pl.BlockSpec((1, E), w2d),               # bk
                pl.BlockSpec((E, E), w2d),               # wv^T (bf16)
                pl.BlockSpec((1, E), w2d),               # bv
                pl.BlockSpec((E, E), w2d),               # wo^T (bf16)
                pl.BlockSpec((1, E), w2d),               # bo
            ],
            out_specs=pl.BlockSpec((block_b, Lq, E), per_b),
            scratch_shapes=[pltpu.VMEM((block_b * Lq, E), jnp.float32)],
        ),
        compiler_params=pltpu.CompilerParams(**cp_kwargs),
    )(q_b, k_b, v_b, wq_t, bq_s, wk_t, bk_r, wv_t, bv_r, wo_t, bo_r)

    # back to (seq, batch, E)
    return jnp.transpose(out_b, (1, 0, 2))


def multihead_attention_ref(query, key, value, params, num_heads):
    """Pure-JAX f32 reference matching the PyTorch forward exactly."""
    Lq, B, E = query.shape
    Lk = key.shape[0]
    hd = E // num_heads
    scaling = float(hd) ** -0.5
    wq, bq = params["q_proj"]
    wk, bk = params["k_proj"]
    wv, bv = params["v_proj"]
    wo, bo = params["out_proj"]

    q = (query @ wq.T + bq) * scaling                      # (Lq, B, E)
    k = key @ wk.T + bk
    v = value @ wv.T + bv

    # (L, B, E) -> (B*H, L, hd), matching view+transpose in PyTorch
    q = q.reshape(Lq, B * num_heads, hd).transpose(1, 0, 2)
    k = k.reshape(Lk, B * num_heads, hd).transpose(1, 0, 2)
    v = v.reshape(Lk, B * num_heads, hd).transpose(1, 0, 2)

    scores = jnp.einsum("bqd,bkd->bqk", q, k)
    p = jax.nn.softmax(scores, axis=-1)
    out = jnp.einsum("bqk,bkd->bqd", p, v)                  # (B*H, Lq, hd)
    out = out.transpose(1, 0, 2).reshape(Lq, B, E)
    return out @ wo.T + bo


def make_params(key, embed_dim):
    keys = jax.random.split(key, 8)
    s = 1.0 / np.sqrt(embed_dim)
    def lin(kw, kb):
        w = jax.random.uniform(kw, (embed_dim, embed_dim), jnp.float32, -s, s)
        b = jax.random.uniform(kb, (embed_dim,), jnp.float32, -s, s)
        return w, b
    return {
        "q_proj": lin(keys[0], keys[1]),
        "k_proj": lin(keys[2], keys[3]),
        "v_proj": lin(keys[4], keys[5]),
        "out_proj": lin(keys[6], keys[7]),
    }


if __name__ == "__main__":
    embed_dim = 32
    num_heads = 4
    tgt_len = 8
    src_len = 8
    bsz = 2

    root = jax.random.PRNGKey(0)
    k_q, k_k, k_v, k_p = jax.random.split(root, 4)
    query = jax.random.normal(k_q, (tgt_len, bsz, embed_dim), jnp.float32)
    key = jax.random.normal(k_k, (src_len, bsz, embed_dim), jnp.float32)
    value = jax.random.normal(k_v, (src_len, bsz, embed_dim), jnp.float32)
    params = make_params(k_p, embed_dim)

    out = multihead_attention_pallas(query, key, value, params, num_heads)
    out = jax.block_until_ready(out)

    ref = multihead_attention_ref(query, key, value, params, num_heads)
    ref = jax.block_until_ready(ref)

    assert out.shape == (tgt_len, bsz, embed_dim)
    # bf16 MXU operands + approx reciprocal -> slightly looser tolerance than f32.
    np.testing.assert_allclose(np.asarray(out), np.asarray(ref),
                               rtol=2e-2, atol=2e-2)
    print("KERNEL_OK")
</pallas_src>

<mosaic_0001>
module attributes {stable_mosaic.version = 11 : i64} {
  func.func @_mha_kernel(%arg0: i32, %arg1: memref<1x8x32xf32, #tpu.memory_space<vmem>>, %arg2: memref<1x8x32xf32, #tpu.memory_space<vmem>>, %arg3: memref<1x8x32xf32, #tpu.memory_space<vmem>>, %arg4: memref<32x32xbf16, #tpu.memory_space<vmem>>, %arg5: memref<1x32xf32, #tpu.memory_space<vmem>>, %arg6: memref<32x32xbf16, #tpu.memory_space<vmem>>, %arg7: memref<1x32xf32, #tpu.memory_space<vmem>>, %arg8: memref<32x32xbf16, #tpu.memory_space<vmem>>, %arg9: memref<1x32xf32, #tpu.memory_space<vmem>>, %arg10: memref<32x32xbf16, #tpu.memory_space<vmem>>, %arg11: memref<1x32xf32, #tpu.memory_space<vmem>>, %arg12: memref<1x8x32xf32, #tpu.memory_space<vmem>>, %arg13: memref<8x32xf32, #tpu.memory_space<vmem>>) attributes {dimension_semantics = [#tpu.dimension_semantics<parallel>], iteration_bounds = array<i64: 2>, scalar_prefetch = 0 : i64, scratch_operands = 1 : i64, tpu.core_type = #tpu.core_type<tc>, window_params = [{transform_indices = @transform_0, window_bounds = array<i64: 1, 8, 32>}, {transform_indices = @transform_1, window_bounds = array<i64: 1, 8, 32>}, {transform_indices = @transform_2, window_bounds = array<i64: 1, 8, 32>}, {pipeline_mode = #tpu.pipeline_mode<synchronous>, transform_indices = @transform_3, window_bounds = array<i64: 32, 32>}, {pipeline_mode = #tpu.pipeline_mode<synchronous>, transform_indices = @transform_4, window_bounds = array<i64: 1, 32>}, {pipeline_mode = #tpu.pipeline_mode<synchronous>, transform_indices = @transform_5, window_bounds = array<i64: 32, 32>}, {pipeline_mode = #tpu.pipeline_mode<synchronous>, transform_indices = @transform_6, window_bounds = array<i64: 1, 32>}, {pipeline_mode = #tpu.pipeline_mode<synchronous>, transform_indices = @transform_7, window_bounds = array<i64: 32, 32>}, {pipeline_mode = #tpu.pipeline_mode<synchronous>, transform_indices = @transform_8, window_bounds = array<i64: 1, 32>}, {pipeline_mode = #tpu.pipeline_mode<synchronous>, transform_indices = @transform_9, window_bounds = array<i64: 32, 32>}, {pipeline_mode = #tpu.pipeline_mode<synchronous>, transform_indices = @transform_10, window_bounds = array<i64: 1, 32>}, {transform_indices = @transform_11, window_bounds = array<i64: 1, 8, 32>}]} {
    %c0 = arith.constant 0 : index
    %c0_0 = arith.constant 0 : index
    %c0_1 = arith.constant 0 : index
    %0 = vector.load %arg1[%c0, %c0_0, %c0_1] : memref<1x8x32xf32, #tpu.memory_space<vmem>>, vector<1x8x32xf32>
    %1 = vector.shape_cast %0 : vector<1x8x32xf32> to vector<8x32xf32>
    %2 = arith.truncf %1 : vector<8x32xf32> to vector<8x32xbf16>
    %c0_2 = arith.constant 0 : index
    %c0_3 = arith.constant 0 : index
    %c0_4 = arith.constant 0 : index
    %3 = vector.load %arg2[%c0_2, %c0_3, %c0_4] : memref<1x8x32xf32, #tpu.memory_space<vmem>>, vector<1x8x32xf32>
    %4 = vector.shape_cast %3 : vector<1x8x32xf32> to vector<8x32xf32>
    %5 = arith.truncf %4 : vector<8x32xf32> to vector<8x32xbf16>
    %c0_5 = arith.constant 0 : index
    %c0_6 = arith.constant 0 : index
    %c0_7 = arith.constant 0 : index
    %6 = vector.load %arg3[%c0_5, %c0_6, %c0_7] : memref<1x8x32xf32, #tpu.memory_space<vmem>>, vector<1x8x32xf32>
    %7 = vector.shape_cast %6 : vector<1x8x32xf32> to vector<8x32xf32>
    %8 = arith.truncf %7 : vector<8x32xf32> to vector<8x32xbf16>
    %c0_8 = arith.constant 0 : index
    %c0_9 = arith.constant 0 : index
    %9 = vector.load %arg4[%c0_8, %c0_9] : memref<32x32xbf16, #tpu.memory_space<vmem>>, vector<32x32xbf16>
    %cst = arith.constant dense<0.000000e+00> : vector<8x32xf32>
    %10 = tpu.matmul %2, %9, %cst {dimension_numbers = #tpu.dot_dimension_numbers<[1], [0], [0], [1], [0, 0, 1, 1], [], []>} : vector<8x32xbf16>, vector<32x32xbf16>, vector<8x32xf32> -> vector<8x32xf32>
    %c0_10 = arith.constant 0 : index
    %c0_11 = arith.constant 0 : index
    %11 = vector.load %arg5[%c0_10, %c0_11] : memref<1x32xf32, #tpu.memory_space<vmem>>, vector<1x32xf32>
    %12 = vector.broadcast %11 : vector<1x32xf32> to vector<8x32xf32>
    %13 = arith.addf %10, %12 : vector<8x32xf32>
    %c0_12 = arith.constant 0 : index
    %c0_13 = arith.constant 0 : index
    %14 = vector.load %arg6[%c0_12, %c0_13] : memref<32x32xbf16, #tpu.memory_space<vmem>>, vector<32x32xbf16>
    %cst_14 = arith.constant dense<0.000000e+00> : vector<8x32xf32>
    %15 = tpu.matmul %5, %14, %cst_14 {dimension_numbers = #tpu.dot_dimension_numbers<[1], [0], [0], [1], [0, 0, 1, 1], [], []>} : vector<8x32xbf16>, vector<32x32xbf16>, vector<8x32xf32> -> vector<8x32xf32>
    %c0_15 = arith.constant 0 : index
    %c0_16 = arith.constant 0 : index
    %16 = vector.load %arg7[%c0_15, %c0_16] : memref<1x32xf32, #tpu.memory_space<vmem>>, vector<1x32xf32>
    %17 = vector.broadcast %16 : vector<1x32xf32> to vector<8x32xf32>
    %18 = arith.addf %15, %17 : vector<8x32xf32>
    %c0_17 = arith.constant 0 : index
    %c0_18 = arith.constant 0 : index
    %19 = vector.load %arg8[%c0_17, %c0_18] : memref<32x32xbf16, #tpu.memory_space<vmem>>, vector<32x32xbf16>
    %cst_19 = arith.constant dense<0.000000e+00> : vector<8x32xf32>
    %20 = tpu.matmul %8, %19, %cst_19 {dimension_numbers = #tpu.dot_dimension_numbers<[1], [0], [0], [1], [0, 0, 1, 1], [], []>} : vector<8x32xbf16>, vector<32x32xbf16>, vector<8x32xf32> -> vector<8x32xf32>
    %c0_20 = arith.constant 0 : index
    %c0_21 = arith.constant 0 : index
    %21 = vector.load %arg9[%c0_20, %c0_21] : memref<1x32xf32, #tpu.memory_space<vmem>>, vector<1x32xf32>
    %22 = vector.broadcast %21 : vector<1x32xf32> to vector<8x32xf32>
    %23 = arith.addf %20, %22 : vector<8x32xf32>
    %24 = arith.truncf %13 : vector<8x32xf32> to vector<8x32xbf16>
    %25 = arith.truncf %18 : vector<8x32xf32> to vector<8x32xbf16>
    %26 = arith.truncf %23 : vector<8x32xf32> to vector<8x32xbf16>
    %27 = vector.extract_strided_slice %24 {offsets = [0, 0], sizes = [8, 8], strides = [1, 1]} : vector<8x32xbf16> to vector<8x8xbf16>
    %28 = vector.extract_strided_slice %25 {offsets = [0, 0], sizes = [8, 8], strides = [1, 1]} : vector<8x32xbf16> to vector<8x8xbf16>
    %29 = vector.extract_strided_slice %26 {offsets = [0, 0], sizes = [8, 8], strides = [1, 1]} : vector<8x32xbf16> to vector<8x8xbf16>
    %cst_22 = arith.constant dense<0.000000e+00> : vector<8x8xf32>
    %30 = tpu.matmul %27, %28, %cst_22 {dimension_numbers = #tpu.dot_dimension_numbers<[1], [1], [0], [0], [0, 0, 1, 0], [], []>} : vector<8x8xbf16>, vector<8x8xbf16>, vector<8x8xf32> -> vector<8x8xf32>
    %cst_23 = arith.constant dense<0xFF800000> : vector<8xf32>
    %31 = vector.multi_reduction <maximumf>, %30, %cst_23 [1] : vector<8x8xf32> to vector<8xf32>
    %32 = vector.shape_cast %31 : vector<8xf32> to vector<8x1xf32>
    %33 = vector.broadcast %32 : vector<8x1xf32> to vector<8x8xf32>
    %34 = arith.subf %30, %33 : vector<8x8xf32>
    %35 = math.exp %34 : vector<8x8xf32>
    %cst_24 = arith.constant dense<0.000000e+00> : vector<8xf32>
    %36 = vector.multi_reduction <add>, %35, %cst_24 [1] : vector<8x8xf32> to vector<8xf32>
    %37 = vector.shape_cast %36 : vector<8xf32> to vector<8x1xf32>
    %38 = tpu.reciprocal %37 {approx = true} : vector<8x1xf32> -> vector<8x1xf32>
    %39 = vector.broadcast %38 : vector<8x1xf32> to vector<8x8xf32>
    %40 = arith.mulf %35, %39 : vector<8x8xf32>
    %41 = arith.truncf %40 : vector<8x8xf32> to vector<8x8xbf16>
    %cst_25 = arith.constant dense<0.000000e+00> : vector<8x8xf32>
    %42 = tpu.matmul %41, %29, %cst_25 {dimension_numbers = #tpu.dot_dimension_numbers<[1], [0], [0], [1], [0, 0, 1, 1], [], []>} : vector<8x8xbf16>, vector<8x8xbf16>, vector<8x8xf32> -> vector<8x8xf32>
    %c0_26 = arith.constant 0 : index
    %c0_27 = arith.constant 0 : index
    %43 = vector.load %arg13[%c0_26, %c0_27] : memref<8x32xf32, #tpu.memory_space<vmem>>, vector<8x8xf32>
    tpu.vector_store %arg13[%c0_26, %c0_27], %42 {strides = array<i32>} : memref<8x32xf32, #tpu.memory_space<vmem>>, vector<8x8xf32>,
    %44 = vector.extract_strided_slice %24 {offsets = [0, 8], sizes = [8, 8], strides = [1, 1]} : vector<8x32xbf16> to vector<8x8xbf16>
    %45 = vector.extract_strided_slice %25 {offsets = [0, 8], sizes = [8, 8], strides = [1, 1]} : vector<8x32xbf16> to vector<8x8xbf16>
    %46 = vector.extract_strided_slice %26 {offsets = [0, 8], sizes = [8, 8], strides = [1, 1]} : vector<8x32xbf16> to vector<8x8xbf16>
    %cst_28 = arith.constant dense<0.000000e+00> : vector<8x8xf32>
    %47 = tpu.matmul %44, %45, %cst_28 {dimension_numbers = #tpu.dot_dimension_numbers<[1], [1], [0], [0], [0, 0, 1, 0], [], []>} : vector<8x8xbf16>, vector<8x8xbf16>, vector<8x8xf32> -> vector<8x8xf32>
    %cst_29 = arith.constant dense<0xFF800000> : vector<8xf32>
    %48 = vector.multi_reduction <maximumf>, %47, %cst_29 [1] : vector<8x8xf32> to vector<8xf32>
    %49 = vector.shape_cast %48 : vector<8xf32> to vector<8x1xf32>
    %50 = vector.broadcast %49 : vector<8x1xf32> to vector<8x8xf32>
    %51 = arith.subf %47, %50 : vector<8x8xf32>
    %52 = math.exp %51 : vector<8x8xf32>
    %cst_30 = arith.constant dense<0.000000e+00> : vector<8xf32>
    %53 = vector.multi_reduction <add>, %52, %cst_30 [1] : vector<8x8xf32> to vector<8xf32>
    %54 = vector.shape_cast %53 : vector<8xf32> to vector<8x1xf32>
    %55 = tpu.reciprocal %54 {approx = true} : vector<8x1xf32> -> vector<8x1xf32>
    %56 = vector.broadcast %55 : vector<8x1xf32> to vector<8x8xf32>
    %57 = arith.mulf %52, %56 : vector<8x8xf32>
    %58 = arith.truncf %57 : vector<8x8xf32> to vector<8x8xbf16>
    %cst_31 = arith.constant dense<0.000000e+00> : vector<8x8xf32>
    %59 = tpu.matmul %58, %46, %cst_31 {dimension_numbers = #tpu.dot_dimension_numbers<[1], [0], [0], [1], [0, 0, 1, 1], [], []>} : vector<8x8xbf16>, vector<8x8xbf16>, vector<8x8xf32> -> vector<8x8xf32>
    %c0_32 = arith.constant 0 : index
    %c8 = arith.constant 8 : index
    %60 = vector.load %arg13[%c0_32, %c8] : memref<8x32xf32, #tpu.memory_space<vmem>>, vector<8x8xf32>
    tpu.vector_store %arg13[%c0_32, %c8], %59 {strides = array<i32>} : memref<8x32xf32, #tpu.memory_space<vmem>>, vector<8x8xf32>,
    %61 = vector.extract_strided_slice %24 {offsets = [0, 16], sizes = [8, 8], strides = [1, 1]} : vector<8x32xbf16> to vector<8x8xbf16>
    %62 = vector.extract_strided_slice %25 {offsets = [0, 16], sizes = [8, 8], strides = [1, 1]} : vector<8x32xbf16> to vector<8x8xbf16>
    %63 = vector.extract_strided_slice %26 {offsets = [0, 16], sizes = [8, 8], strides = [1, 1]} : vector<8x32xbf16> to vector<8x8xbf16>
    %cst_33 = arith.constant dense<0.000000e+00> : vector<8x8xf32>
    %64 = tpu.matmul %61, %62, %cst_33 {dimension_numbers = #tpu.dot_dimension_numbers<[1], [1], [0], [0], [0, 0, 1, 0], [], []>} : vector<8x8xbf16>, vector<8x8xbf16>, vector<8x8xf32> -> vector<8x8xf32>
    %cst_34 = arith.constant dense<0xFF800000> : vector<8xf32>
    %65 = vector.multi_reduction <maximumf>, %64, %cst_34 [1] : vector<8x8xf32> to vector<8xf32>
    %66 = vector.shape_cast %65 : vector<8xf32> to vector<8x1xf32>
    %67 = vector.broadcast %66 : vector<8x1xf32> to vector<8x8xf32>
    %68 = arith.subf %64, %67 : vector<8x8xf32>
    %69 = math.exp %68 : vector<8x8xf32>
    %cst_35 = arith.constant dense<0.000000e+00> : vector<8xf32>
    %70 = vector.multi_reduction <add>, %69, %cst_35 [1] : vector<8x8xf32> to vector<8xf32>
    %71 = vector.shape_cast %70 : vector<8xf32> to vector<8x1xf32>
    %72 = tpu.reciprocal %71 {approx = true} : vector<8x1xf32> -> vector<8x1xf32>
    %73 = vector.broadcast %72 : vector<8x1xf32> to vector<8x8xf32>
    %74 = arith.mulf %69, %73 : vector<8x8xf32>
    %75 = arith.truncf %74 : vector<8x8xf32> to vector<8x8xbf16>
    %cst_36 = arith.constant dense<0.000000e+00> : vector<8x8xf32>
    %76 = tpu.matmul %75, %63, %cst_36 {dimension_numbers = #tpu.dot_dimension_numbers<[1], [0], [0], [1], [0, 0, 1, 1], [], []>} : vector<8x8xbf16>, vector<8x8xbf16>, vector<8x8xf32> -> vector<8x8xf32>
    %c0_37 = arith.constant 0 : index
    %c16 = arith.constant 16 : index
    %77 = vector.load %arg13[%c0_37, %c16] : memref<8x32xf32, #tpu.memory_space<vmem>>, vector<8x8xf32>
    tpu.vector_store %arg13[%c0_37, %c16], %76 {strides = array<i32>} : memref<8x32xf32, #tpu.memory_space<vmem>>, vector<8x8xf32>,
    %78 = vector.extract_strided_slice %24 {offsets = [0, 24], sizes = [8, 8], strides = [1, 1]} : vector<8x32xbf16> to vector<8x8xbf16>
    %79 = vector.extract_strided_slice %25 {offsets = [0, 24], sizes = [8, 8], strides = [1, 1]} : vector<8x32xbf16> to vector<8x8xbf16>
    %80 = vector.extract_strided_slice %26 {offsets = [0, 24], sizes = [8, 8], strides = [1, 1]} : vector<8x32xbf16> to vector<8x8xbf16>
    %cst_38 = arith.constant dense<0.000000e+00> : vector<8x8xf32>
    %81 = tpu.matmul %78, %79, %cst_38 {dimension_numbers = #tpu.dot_dimension_numbers<[1], [1], [0], [0], [0, 0, 1, 0], [], []>} : vector<8x8xbf16>, vector<8x8xbf16>, vector<8x8xf32> -> vector<8x8xf32>
    %cst_39 = arith.constant dense<0xFF800000> : vector<8xf32>
    %82 = vector.multi_reduction <maximumf>, %81, %cst_39 [1] : vector<8x8xf32> to vector<8xf32>
    %83 = vector.shape_cast %82 : vector<8xf32> to vector<8x1xf32>
    %84 = vector.broadcast %83 : vector<8x1xf32> to vector<8x8xf32>
    %85 = arith.subf %81, %84 : vector<8x8xf32>
    %86 = math.exp %85 : vector<8x8xf32>
    %cst_40 = arith.constant dense<0.000000e+00> : vector<8xf32>
    %87 = vector.multi_reduction <add>, %86, %cst_40 [1] : vector<8x8xf32> to vector<8xf32>
    %88 = vector.shape_cast %87 : vector<8xf32> to vector<8x1xf32>
    %89 = tpu.reciprocal %88 {approx = true} : vector<8x1xf32> -> vector<8x1xf32>
    %90 = vector.broadcast %89 : vector<8x1xf32> to vector<8x8xf32>
    %91 = arith.mulf %86, %90 : vector<8x8xf32>
    %92 = arith.truncf %91 : vector<8x8xf32> to vector<8x8xbf16>
    %cst_41 = arith.constant dense<0.000000e+00> : vector<8x8xf32>
    %93 = tpu.matmul %92, %80, %cst_41 {dimension_numbers = #tpu.dot_dimension_numbers<[1], [0], [0], [1], [0, 0, 1, 1], [], []>} : vector<8x8xbf16>, vector<8x8xbf16>, vector<8x8xf32> -> vector<8x8xf32>
    %c0_42 = arith.constant 0 : index
    %c24 = arith.constant 24 : index
    %94 = vector.load %arg13[%c0_42, %c24] : memref<8x32xf32, #tpu.memory_space<vmem>>, vector<8x8xf32>
    tpu.vector_store %arg13[%c0_42, %c24], %93 {strides = array<i32>} : memref<8x32xf32, #tpu.memory_space<vmem>>, vector<8x8xf32>,
    %c0_43 = arith.constant 0 : index
    %c0_44 = arith.constant 0 : index
    %95 = vector.load %arg13[%c0_43, %c0_44] : memref<8x32xf32, #tpu.memory_space<vmem>>, vector<8x32xf32>
    %96 = arith.truncf %95 : vector<8x32xf32> to vector<8x32xbf16>
    %c0_45 = arith.constant 0 : index
    %c0_46 = arith.constant 0 : index
    %97 = vector.load %arg10[%c0_45, %c0_46] : memref<32x32xbf16, #tpu.memory_space<vmem>>, vector<32x32xbf16>
    %cst_47 = arith.constant dense<0.000000e+00> : vector<8x32xf32>
    %98 = tpu.matmul %96, %97, %cst_47 {dimension_numbers = #tpu.dot_dimension_numbers<[1], [0], [0], [1], [0, 0, 1, 1], [], []>} : vector<8x32xbf16>, vector<32x32xbf16>, vector<8x32xf32> -> vector<8x32xf32>
    %c0_48 = arith.constant 0 : index
    %c0_49 = arith.constant 0 : index
    %99 = vector.load %arg11[%c0_48, %c0_49] : memref<1x32xf32, #tpu.memory_space<vmem>>, vector<1x32xf32>
    %100 = vector.broadcast %99 : vector<1x32xf32> to vector<8x32xf32>
    %101 = arith.addf %98, %100 : vector<8x32xf32>
    %102 = vector.shape_cast %101 : vector<8x32xf32> to vector<1x8x32xf32>
    %c0_50 = arith.constant 0 : index
    %c0_51 = arith.constant 0 : index
    %c0_52 = arith.constant 0 : index
    %103 = vector.load %arg12[%c0_50, %c0_51, %c0_52] : memref<1x8x32xf32, #tpu.memory_space<vmem>>, vector<1x8x32xf32>
    tpu.vector_store %arg12[%c0_50, %c0_51, %c0_52], %102 {strides = array<i32>} : memref<1x8x32xf32, #tpu.memory_space<vmem>>, vector<1x8x32xf32>,
    return
  }
  func.func @transform_0(%arg0: i32) -> (i32, i32, i32) {
    %c0_i32 = arith.constant 0 : i32
    %c0_i32_0 = arith.constant 0 : i32
    %c0_i32_1 = arith.constant 0 : i32
    return %arg0, %c0_i32, %c0_i32_0 : i32, i32, i32
  }
  func.func @transform_1(%arg0: i32) -> (i32, i32, i32) {
    %c0_i32 = arith.constant 0 : i32
    %c0_i32_0 = arith.constant 0 : i32
    %c0_i32_1 = arith.constant 0 : i32
    return %arg0, %c0_i32, %c0_i32_0 : i32, i32, i32
  }
  func.func @transform_2(%arg0: i32) -> (i32, i32, i32) {
    %c0_i32 = arith.constant 0 : i32
    %c0_i32_0 = arith.constant 0 : i32
    %c0_i32_1 = arith.constant 0 : i32
    return %arg0, %c0_i32, %c0_i32_0 : i32, i32, i32
  }
  func.func @transform_3(%arg0: i32) -> (i32, i32) {
    %c0_i32 = arith.constant 0 : i32
    %c0_i32_0 = arith.constant 0 : i32
    %c0_i32_1 = arith.constant 0 : i32
    return %c0_i32, %c0_i32_0 : i32, i32
  }
  func.func @transform_4(%arg0: i32) -> (i32, i32) {
    %c0_i32 = arith.constant 0 : i32
    %c0_i32_0 = arith.constant 0 : i32
    %c0_i32_1 = arith.constant 0 : i32
    return %c0_i32, %c0_i32_0 : i32, i32
  }
  func.func @transform_5(%arg0: i32) -> (i32, i32) {
    %c0_i32 = arith.constant 0 : i32
    %c0_i32_0 = arith.constant 0 : i32
    %c0_i32_1 = arith.constant 0 : i32
    return %c0_i32, %c0_i32_0 : i32, i32
  }
  func.func @transform_6(%arg0: i32) -> (i32, i32) {
    %c0_i32 = arith.constant 0 : i32
    %c0_i32_0 = arith.constant 0 : i32
    %c0_i32_1 = arith.constant 0 : i32
    return %c0_i32, %c0_i32_0 : i32, i32
  }
  func.func @transform_7(%arg0: i32) -> (i32, i32) {
    %c0_i32 = arith.constant 0 : i32
    %c0_i32_0 = arith.constant 0 : i32
    %c0_i32_1 = arith.constant 0 : i32
    return %c0_i32, %c0_i32_0 : i32, i32
  }
  func.func @transform_8(%arg0: i32) -> (i32, i32) {
    %c0_i32 = arith.constant 0 : i32
    %c0_i32_0 = arith.constant 0 : i32
    %c0_i32_1 = arith.constant 0 : i32
    return %c0_i32, %c0_i32_0 : i32, i32
  }
  func.func @transform_9(%arg0: i32) -> (i32, i32) {
    %c0_i32 = arith.constant 0 : i32
    %c0_i32_0 = arith.constant 0 : i32
    %c0_i32_1 = arith.constant 0 : i32
    return %c0_i32, %c0_i32_0 : i32, i32
  }
  func.func @transform_10(%arg0: i32) -> (i32, i32) {
    %c0_i32 = arith.constant 0 : i32
    %c0_i32_0 = arith.constant 0 : i32
    %c0_i32_1 = arith.constant 0 : i32
    return %c0_i32, %c0_i32_0 : i32, i32
  }
  func.func @transform_11(%arg0: i32) -> (i32, i32, i32) {
    %c0_i32 = arith.constant 0 : i32
    %c0_i32_0 = arith.constant 0 : i32
    %c0_i32_1 = arith.constant 0 : i32
    return %arg0, %c0_i32, %c0_i32_0 : i32, i32, i32
  }
}

</mosaic_0001>

<llo_original>
// kernel: tpu_custom_call.1
$region0: #{tpu_custom_call.1}
  #allocation0 [shape = 'u32[]', space=smem, size = 0x4, offset = 0x4, fixed_abs, tag = 'smem constant byte address 0x4 - core index']
  #allocation1 [shape = 'u32[144,128]{1,0:T(1,128)}', space=vmem, size = 0x12000, scoped, tag = 'internal scratch']
  #allocation2 [shape = 'f32[8,32]{1,0:T(8,128)}', space=vmem, size = 0x1000, scoped, tag = 'scratch operand']
  %s0 = inlined_call_operand.hbm [shape: f32[2,8,32], index: 0, kind: input, shape index: {}]
  %s1 = inlined_call_operand.hbm [shape: f32[2,8,32], index: 1, kind: input, shape index: {}]
  %s2 = inlined_call_operand.hbm [shape: f32[2,8,32], index: 2, kind: input, shape index: {}]
  %s3 = inlined_call_operand.hbm [shape: bf16[32,32], index: 3, kind: input, shape index: {}]
  %s4 = inlined_call_operand.hbm [shape: f32[1,32], index: 4, kind: input, shape index: {}]
  %s5 = inlined_call_operand.hbm [shape: bf16[32,32], index: 5, kind: input, shape index: {}]
  %s6 = inlined_call_operand.hbm [shape: f32[1,32], index: 6, kind: input, shape index: {}]
  %s7 = inlined_call_operand.hbm [shape: bf16[32,32], index: 7, kind: input, shape index: {}]
  %s8 = inlined_call_operand.hbm [shape: f32[1,32], index: 8, kind: input, shape index: {}]
  %s9 = inlined_call_operand.vmem [shape: bf16[32,32], index: 9, kind: input, shape index: {}]
  %s10 = inlined_call_operand.vmem [shape: f32[1,32], index: 10, kind: input, shape index: {}]
  %s11 = inlined_call_operand.hbm [shape: f32[2,8,32], index: 11, kind: output, shape index: {}]
  %s12 = sld [smem:[#allocation0]]
  $region113: #{tpu_custom_call.1} parent=0
    _
  %s14 = ssub.s32 1, %s12
  %s15 = scalar_select 0, %s14, %s12
  $region1: #{tpu_custom_call.1} parent=0
    #allocation3 [shape = 'u8[8192]{0}', space=vmem, size = 0x2000, scoped, tag = 'input window, operand 0']
    #allocation4 [shape = 's32[2]{0}', space=sflag, size = 0x8, scoped, tag = 'scoped memory for tpu_custom_call.1']
    #allocation5 [shape = 's32[2]{0}', space=sflag, size = 0x8, scoped, tag = 'scoped memory for tpu_custom_call.1']
    #allocation6 [shape = 'u8[8192]{0}', space=vmem, size = 0x2000, scoped, tag = 'input window, operand 1']
    #allocation7 [shape = 's32[2]{0}', space=sflag, size = 0x8, scoped, tag = 'scoped memory for tpu_custom_call.1']
    #allocation8 [shape = 'u8[8192]{0}', space=vmem, size = 0x2000, scoped, tag = 'input window, operand 2']
    #allocation9 [shape = 'u8[8192]{0}', space=vmem, size = 0x2000, scoped, tag = 'input window, operand 3, single buffered']
    #allocation10 [shape = 's32[1]{0}', space=sflag, size = 0x4, scoped, tag = 'scoped memory for tpu_custom_call.1']
    #allocation11 [shape = 'u8[512]{0}', space=vmem, size = 0x400, scoped, tag = 'input window, operand 4, single buffered']
    #allocation12 [shape = 'u8[8192]{0}', space=vmem, size = 0x2000, scoped, tag = 'input window, operand 5, single buffered']
    #allocation13 [shape = 's32[1]{0}', space=sflag, size = 0x4, scoped, tag = 'scoped memory for tpu_custom_call.1']
    #allocation14 [shape = 'u8[512]{0}', space=vmem, size = 0x400, scoped, tag = 'input window, operand 6, single buffered']
    #allocation15 [shape = 'u8[8192]{0}', space=vmem, size = 0x2000, scoped, tag = 'input window, operand 7, single buffered']
    #allocation16 [shape = 's32[1]{0}', space=sflag, size = 0x4, scoped, tag = 'scoped memory for tpu_custom_call.1']
    #allocation17 [shape = 'u8[512]{0}', space=vmem, size = 0x400, scoped, tag = 'input window, operand 8, single buffered']
    #allocation18 [shape = 'u8[8192]{0}', space=vmem, size = 0x2000, scoped, tag = 'output window, operand 0']
    %16 = vsyncpa [#allocation4], 0
    %s17 = scalar_lea.sflag [#allocation4], 1
    %18 = vsyncpa %s17, 0
    %19 = vsyncpa [#allocation7], 0
    %s20 = scalar_lea.sflag [#allocation7], 1
    %21 = vsyncpa %s20, 0
    %22 = vsyncpa [#allocation10], 0
    %23 = vsyncpa [#allocation13], 0
    %24 = vsyncpa [#allocation16], 0
    %25 = vsyncpa [#allocation5], 0
    %s26 = scalar_lea.sflag [#allocation5], 1
    %27 = vsyncpa %s26, 0
    loop: start=0, step=1, limit=4
    $region2: #{tpu_custom_call.1} parent=1 // loop_pre_header
      _
    $region3: #{tpu_custom_call.1} parent=1 // loop_header
      %s29 = sphi 0, %s33
      %p30 = scmp.ge.s32.totalorder %s29, 4
      %s39 = sphi 0, %s41
      %s42 = sphi 0, %s39
      %s43 = sphi 0, %s42
      %s59 = sphi 0, %s43
      %s65 = sphi 0, %s67
      %s68 = sphi 0, %s65
      %s69 = sphi 0, %s68
      %s85 = sphi 0, %s69
      %s91 = sphi 0, %s93
      %s94 = sphi 0, %s91
      %s95 = sphi 0, %s94
      %s111 = sphi 0, %s95
      %s115 = sphi 0, %s115
      %s117 = sphi 0, %s115
      %s118 = sphi 0, %s117
      %s132 = sphi 0, %s118
      %s136 = sphi 0, %s136
      %s138 = sphi 0, %s136
      %s139 = sphi 0, %s138
      %s153 = sphi 0, %s139
      %s157 = sphi 0, %s157
      %s159 = sphi 0, %s157
      %s160 = sphi 0, %s159
      %s174 = sphi 0, %s160
      %s178 = sphi 0, %s178
      %s180 = sphi 0, %s178
      %s181 = sphi 0, %s180
      %s195 = sphi 0, %s181
      %s199 = sphi 0, %s199
      %s201 = sphi 0, %s199
      %s202 = sphi 0, %s201
      %s216 = sphi 0, %s202
      %s220 = sphi 0, %s220
      %s222 = sphi 0, %s220
      %s223 = sphi 0, %s222
      %s237 = sphi 0, %s223
      %s241 = sphi 0, %s241
      %s243 = sphi 0, %s241
      %s244 = sphi 0, %s243
      %s258 = sphi 0, %s244
      %s262 = sphi 0, %s262
      %s264 = sphi 0, %s262
      %s265 = sphi 0, %s264
      %s279 = sphi 0, %s265
      %s285 = sphi 0, %s287
      %s288 = sphi 0, %s285
      %s289 = sphi 0, %s288
      %s305 = sphi 0, %s289
    $region4: #{tpu_custom_call.1} parent=1 // loop_header_branch
      %32 = sbr.rel (%p30) target = $region8
    $region5: #{tpu_custom_call.1} parent=1 // loop_body
      %s34 = ssub.s32 %s29, 1
      %s35 = ssub.s32 %s29, 2
      %s36 = sadd.s32 %s29, 1
      %s37 = ssub.s32 %s29, %s36
      %p38 = scmp.eq.s32.totalorder %s37, 0
      %s40 = sadd.s32 %s39, 1
      %s41 = scalar_select %p38, %s39, %s40
      %p44 = pneg %p38
      %p45 = scmp.eq.s32.totalorder %s29, 1
      %p46 = por %p44, %p45
      %p47 = scmp.ne.s32.totalorder %s39, %s42
      %p48 = scmp.eq.s32.totalorder %s29, 0
      %p49 = por %p47, %p48
      %p50 = scmp.ne.s32.totalorder %s39, %s42
      %p51 = scmp.eq.s32.totalorder %s34, 1
      %p52 = por %p50, %p51
      %p53 = scmp.ne.s32.totalorder %s42, %s43
      %p54 = scmp.eq.s32.totalorder %s34, 0
      %p55 = por %p53, %p54
      %p56 = scmp.ne.s32.totalorder %s42, %s43
      %p57 = scmp.eq.s32.totalorder %s35, 1
      %p58 = por %p56, %p57
      %p60 = scmp.ne.s32.totalorder %s43, %s59
      %p61 = scmp.eq.s32.totalorder %s35, 0
      %p62 = por %p60, %p61
      %s63 = ssub.s32 %s29, %s36
      %p64 = scmp.eq.s32.totalorder %s63, 0
      %s66 = sadd.s32 %s65, 1
      %s67 = scalar_select %p64, %s65, %s66
      %p70 = pneg %p64
      %p71 = scmp.eq.s32.totalorder %s29, 1
      %p72 = por %p70, %p71
      %p73 = scmp.ne.s32.totalorder %s65, %s68
      %p74 = scmp.eq.s32.totalorder %s29, 0
      %p75 = por %p73, %p74
      %p76 = scmp.ne.s32.totalorder %s65, %s68
      %p77 = scmp.eq.s32.totalorder %s34, 1
      %p78 = por %p76, %p77
      %p79 = scmp.ne.s32.totalorder %s68, %s69
      %p80 = scmp.eq.s32.totalorder %s34, 0
      %p81 = por %p79, %p80
      %p82 = scmp.ne.s32.totalorder %s68, %s69
      %p83 = scmp.eq.s32.totalorder %s35, 1
      %p84 = por %p82, %p83
      %p86 = scmp.ne.s32.totalorder %s69, %s85
      %p87 = scmp.eq.s32.totalorder %s35, 0
      %p88 = por %p86, %p87
      %s89 = ssub.s32 %s29, %s36
      %p90 = scmp.eq.s32.totalorder %s89, 0
      %s92 = sadd.s32 %s91, 1
      %s93 = scalar_select %p90, %s91, %s92
      %p96 = pneg %p90
      %p97 = scmp.eq.s32.totalorder %s29, 1
      %p98 = por %p96, %p97
      %p99 = scmp.ne.s32.totalorder %s91, %s94
      %p100 = scmp.eq.s32.totalorder %s29, 0
      %p101 = por %p99, %p100
      %p102 = scmp.ne.s32.totalorder %s91, %s94
      %p103 = scmp.eq.s32.totalorder %s34, 1
      %p104 = por %p102, %p103
      %p105 = scmp.ne.s32.totalorder %s94, %s95
      %p106 = scmp.eq.s32.totalorder %s34, 0
      %p107 = por %p105, %p106
      %p108 = scmp.ne.s32.totalorder %s94, %s95
      %p109 = scmp.eq.s32.totalorder %s35, 1
      %p110 = por %p108, %p109
      %p112 = scmp.ne.s32.totalorder %s95, %s111
      %p113 = scmp.eq.s32.totalorder %s35, 0
      %p114 = por %p112, %p113
      %s116 = sadd.s32 %s115, 1
      %p119 = scmp.eq.s32.totalorder %s29, 1
      %p120 = scmp.ne.s32.totalorder %s115, %s117
      %p121 = scmp.eq.s32.totalorder %s29, 0
      %p122 = por %p120, %p121
      %p123 = scmp.ne.s32.totalorder %s115, %s117
      %p124 = scmp.eq.s32.totalorder %s34, 1
      %p125 = por %p123, %p124
      %p126 = scmp.ne.s32.totalorder %s117, %s118
      %p127 = scmp.eq.s32.totalorder %s34, 0
      %p128 = por %p126, %p127
      %p129 = scmp.ne.s32.totalorder %s117, %s118
      %p130 = scmp.eq.s32.totalorder %s35, 1
      %p131 = por %p129, %p130
      %p133 = scmp.ne.s32.totalorder %s118, %s132
      %p134 = scmp.eq.s32.totalorder %s35, 0
      %p135 = por %p133, %p134
      %s137 = sadd.s32 %s136, 1
      %p140 = scmp.eq.s32.totalorder %s29, 1
      %p141 = scmp.ne.s32.totalorder %s136, %s138
      %p142 = scmp.eq.s32.totalorder %s29, 0
      %p143 = por %p141, %p142
      %p144 = scmp.ne.s32.totalorder %s136, %s138
      %p145 = scmp.eq.s32.totalorder %s34, 1
      %p146 = por %p144, %p145
      %p147 = scmp.ne.s32.totalorder %s138, %s139
      %p148 = scmp.eq.s32.totalorder %s34, 0
      %p149 = por %p147, %p148
      %p150 = scmp.ne.s32.totalorder %s138, %s139
      %p151 = scmp.eq.s32.totalorder %s35, 1
      %p152 = por %p150, %p151
      %p154 = scmp.ne.s32.totalorder %s139, %s153
      %p155 = scmp.eq.s32.totalorder %s35, 0
      %p156 = por %p154, %p155
      %s158 = sadd.s32 %s157, 1
      %p161 = scmp.eq.s32.totalorder %s29, 1
      %p162 = scmp.ne.s32.totalorder %s157, %s159
      %p163 = scmp.eq.s32.totalorder %s29, 0
      %p164 = por %p162, %p163
      %p165 = scmp.ne.s32.totalorder %s157, %s159
      %p166 = scmp.eq.s32.totalorder %s34, 1
      %p167 = por %p165, %p166
      %p168 = scmp.ne.s32.totalorder %s159, %s160
      %p169 = scmp.eq.s32.totalorder %s34, 0
      %p170 = por %p168, %p169
      %p171 = scmp.ne.s32.totalorder %s159, %s160
      %p172 = scmp.eq.s32.totalorder %s35, 1
      %p173 = por %p171, %p172
      %p175 = scmp.ne.s32.totalorder %s160, %s174
      %p176 = scmp.eq.s32.totalorder %s35, 0
      %p177 = por %p175, %p176
      %s179 = sadd.s32 %s178, 1
      %p182 = scmp.eq.s32.totalorder %s29, 1
      %p183 = scmp.ne.s32.totalorder %s178, %s180
      %p184 = scmp.eq.s32.totalorder %s29, 0
      %p185 = por %p183, %p184
      %p186 = scmp.ne.s32.totalorder %s178, %s180
      %p187 = scmp.eq.s32.totalorder %s34, 1
      %p188 = por %p186, %p187
      %p189 = scmp.ne.s32.totalorder %s180, %s181
      %p190 = scmp.eq.s32.totalorder %s34, 0
      %p191 = por %p189, %p190
      %p192 = scmp.ne.s32.totalorder %s180, %s181
      %p193 = scmp.eq.s32.totalorder %s35, 1
      %p194 = por %p192, %p193
      %p196 = scmp.ne.s32.totalorder %s181, %s195
      %p197 = scmp.eq.s32.totalorder %s35, 0
      %p198 = por %p196, %p197
      %s200 = sadd.s32 %s199, 1
      %p203 = scmp.eq.s32.totalorder %s29, 1
      %p204 = scmp.ne.s32.totalorder %s199, %s201
      %p205 = scmp.eq.s32.totalorder %s29, 0
      %p206 = por %p204, %p205
      %p207 = scmp.ne.s32.totalorder %s199, %s201
      %p208 = scmp.eq.s32.totalorder %s34, 1
      %p209 = por %p207, %p208
      %p210 = scmp.ne.s32.totalorder %s201, %s202
      %p211 = scmp.eq.s32.totalorder %s34, 0
      %p212 = por %p210, %p211
      %p213 = scmp.ne.s32.totalorder %s201, %s202
      %p214 = scmp.eq.s32.totalorder %s35, 1
      %p215 = por %p213, %p214
      %p217 = scmp.ne.s32.totalorder %s202, %s216
      %p218 = scmp.eq.s32.totalorder %s35, 0
      %p219 = por %p217, %p218
      %s221 = sadd.s32 %s220, 1
      %p224 = scmp.eq.s32.totalorder %s29, 1
      %p225 = scmp.ne.s32.totalorder %s220, %s222
      %p226 = scmp.eq.s32.totalorder %s29, 0
      %p227 = por %p225, %p226
      %p228 = scmp.ne.s32.totalorder %s220, %s222
      %p229 = scmp.eq.s32.totalorder %s34, 1
      %p230 = por %p228, %p229
      %p231 = scmp.ne.s32.totalorder %s222, %s223
      %p232 = scmp.eq.s32.totalorder %s34, 0
      %p233 = por %p231, %p232
      %p234 = scmp.ne.s32.totalorder %s222, %s223
      %p235 = scmp.eq.s32.totalorder %s35, 1
      %p236 = por %p234, %p235
      %p238 = scmp.ne.s32.totalorder %s223, %s237
      %p239 = scmp.eq.s32.totalorder %s35, 0
      %p240 = por %p238, %p239
      %s242 = sadd.s32 %s241, 1
      %p245 = scmp.eq.s32.totalorder %s29, 1
      %p246 = scmp.ne.s32.totalorder %s241, %s243
      %p247 = scmp.eq.s32.totalorder %s29, 0
      %p248 = por %p246, %p247
      %p249 = scmp.ne.s32.totalorder %s241, %s243
      %p250 = scmp.eq.s32.totalorder %s34, 1
      %p251 = por %p249, %p250
      %p252 = scmp.ne.s32.totalorder %s243, %s244
      %p253 = scmp.eq.s32.totalorder %s34, 0
      %p254 = por %p252, %p253
      %p255 = scmp.ne.s32.totalorder %s243, %s244
      %p256 = scmp.eq.s32.totalorder %s35, 1
      %p257 = por %p255, %p256
      %p259 = scmp.ne.s32.totalorder %s244, %s258
      %p260 = scmp.eq.s32.totalorder %s35, 0
      %p261 = por %p259, %p260
      %s263 = sadd.s32 %s262, 1
      %p266 = scmp.eq.s32.totalorder %s29, 1
      %p267 = scmp.ne.s32.totalorder %s262, %s264
      %p268 = scmp.eq.s32.totalorder %s29, 0
      %p269 = por %p267, %p268
      %p270 = scmp.ne.s32.totalorder %s262, %s264
      %p271 = scmp.eq.s32.totalorder %s34, 1
      %p272 = por %p270, %p271
      %p273 = scmp.ne.s32.totalorder %s264, %s265
      %p274 = scmp.eq.s32.totalorder %s34, 0
      %p275 = por %p273, %p274
      %p276 = scmp.ne.s32.totalorder %s264, %s265
      %p277 = scmp.eq.s32.totalorder %s35, 1
      %p278 = por %p276, %p277
      %p280 = scmp.ne.s32.totalorder %s265, %s279
      %p281 = scmp.eq.s32.totalorder %s35, 0
      %p282 = por %p280, %p281
      %s283 = ssub.s32 %s29, %s36
      %p284 = scmp.eq.s32.totalorder %s283, 0
      %s286 = sadd.s32 %s285, 1
      %s287 = scalar_select %p284, %s285, %s286
      %p290 = pneg %p284
      %p291 = scmp.eq.s32.totalorder %s29, 1
      %p292 = por %p290, %p291
      %p293 = scmp.ne.s32.totalorder %s285, %s288
      %p294 = scmp.eq.s32.totalorder %s29, 0
      %p295 = por %p293, %p294
      %p296 = scmp.ne.s32.totalorder %s285, %s288
      %p297 = scmp.eq.s32.totalorder %s34, 1
      %p298 = por %p296, %p297
      %p299 = scmp.ne.s32.totalorder %s288, %s289
      %p300 = scmp.eq.s32.totalorder %s34, 0
      %p301 = por %p299, %p300
      %p302 = scmp.ne.s32.totalorder %s288, %s289
      %p303 = scmp.eq.s32.totalorder %s35, 1
      %p304 = por %p302, %p303
      %p306 = scmp.ne.s32.totalorder %s289, %s305
      %p307 = scmp.eq.s32.totalorder %s35, 0
      %p308 = por %p306, %p307
      %p309 = scmp.le.s32.totalorder 1, %s29
      %p310 = scmp.lt.s32.totalorder %s29, 3
      %p311 = pnand %p309, %p310
      %p312 = pneg %p311
      // Predicated region
      $region9: #{tpu_custom_call.1} parent=5 // pred_check
        _
      $region10: #{tpu_custom_call.1} parent=5 // pred_check_branch
        %314 = sbr.rel (%p311) target = $region12
      $region11: #{tpu_custom_call.1} parent=5 // pred_region
        %s315 = ssub.s32 %s29, 1
        // Predicated region
        $region13: #{tpu_custom_call.1} parent=11 // pred_check
          %p316 = pneg %p128
        $region14: #{tpu_custom_call.1} parent=11 // pred_check_branch
          %318 = sbr.rel (%p316) target = $region16
        $region15: #{tpu_custom_call.1} parent=11 // pred_region
          %s320 = ssub.s32 256, 256
          %321 = vsyncadd [#allocation10], %s320
          %s322 = sshll.u32 [#allocation9], 4
          %s323 = int_to_ptr.vmem [resolvable:$true] %s322
          %328 = dma.hbm_to_vmem [thread:$0]  %s3, 256, %s323, [#allocation10], 64, 64, 4
        $region16: #{tpu_custom_call.1} parent=11 // pred_fallthru
          _
        // Predicated region
        $region17: #{tpu_custom_call.1} parent=11 // pred_check
          %p329 = pneg %p149
        $region18: #{tpu_custom_call.1} parent=11 // pred_check_branch
          %331 = sbr.rel (%p329) target = $region20
        $region19: #{tpu_custom_call.1} parent=11 // pred_region
          %s333 = ssub.s32 16, 16
          %334 = vsyncadd [#allocation10], %s333
          %s336 = sshll.u32 [#allocation11], 4
          %s337 = int_to_ptr.vmem [resolvable:$true] %s336
          %339 = dma.hbm_to_vmem [thread:$0]  %s4, 16, %s337, [#allocation10]
        $region20: #{tpu_custom_call.1} parent=11 // pred_fallthru
          _
        // Predicated region
        $region21: #{tpu_custom_call.1} parent=11 // pred_check
          %p340 = pneg %p170
        $region22: #{tpu_custom_call.1} parent=11 // pred_check_branch
          %342 = sbr.rel (%p340) target = $region24
        $region23: #{tpu_custom_call.1} parent=11 // pred_region
          %s344 = ssub.s32 256, 256
          %345 = vsyncadd [#allocation13], %s344
          %s346 = sshll.u32 [#allocation12], 4
          %s347 = int_to_ptr.vmem [resolvable:$true] %s346
          %352 = dma.hbm_to_vmem [thread:$0]  %s5, 256, %s347, [#allocation13], 64, 64, 4
        $region24: #{tpu_custom_call.1} parent=11 // pred_fallthru
          _
        // Predicated region
        $region25: #{tpu_custom_call.1} parent=11 // pred_check
          %p353 = pneg %p191
        $region26: #{tpu_custom_call.1} parent=11 // pred_check_branch
          %355 = sbr.rel (%p353) target = $region28
        $region27: #{tpu_custom_call.1} parent=11 // pred_region
          %s357 = ssub.s32 16, 16
          %358 = vsyncadd [#allocation13], %s357
          %s360 = sshll.u32 [#allocation14], 4
          %s361 = int_to_ptr.vmem [resolvable:$true] %s360
          %363 = dma.hbm_to_vmem [thread:$0]  %s6, 16, %s361, [#allocation13]
        $region28: #{tpu_custom_call.1} parent=11 // pred_fallthru
          _
        // Predicated region
        $region29: #{tpu_custom_call.1} parent=11 // pred_check
          %p364 = pneg %p212
        $region30: #{tpu_custom_call.1} parent=11 // pred_check_branch
          %366 = sbr.rel (%p364) target = $region32
        $region31: #{tpu_custom_call.1} parent=11 // pred_region
          %s368 = ssub.s32 256, 256
          %369 = vsyncadd [#allocation16], %s368
          %s370 = sshll.u32 [#allocation15], 4
          %s371 = int_to_ptr.vmem [resolvable:$true] %s370
          %376 = dma.hbm_to_vmem [thread:$0]  %s7, 256, %s371, [#allocation16], 64, 64, 4
        $region32: #{tpu_custom_call.1} parent=11 // pred_fallthru
          _
        // Predicated region
        $region33: #{tpu_custom_call.1} parent=11 // pred_check
          %p377 = pneg %p233
        $region34: #{tpu_custom_call.1} parent=11 // pred_check_branch
          %379 = sbr.rel (%p377) target = $region36
        $region35: #{tpu_custom_call.1} parent=11 // pred_region
          %s381 = ssub.s32 16, 16
          %382 = vsyncadd [#allocation16], %s381
          %s384 = sshll.u32 [#allocation17], 4
          %s385 = int_to_ptr.vmem [resolvable:$true] %s384
          %387 = dma.hbm_to_vmem [thread:$0]  %s8, 16, %s385, [#allocation16]
        $region36: #{tpu_custom_call.1} parent=11 // pred_fallthru
          _
        // Predicated region
        $region37: #{tpu_custom_call.1} parent=11 // pred_check
          %p388 = pneg %p254
        $region38: #{tpu_custom_call.1} parent=11 // pred_check_branch
          %390 = sbr.rel (%p388) target = $region40
        $region39: #{tpu_custom_call.1} parent=11 // pred_region
          _
        $region40: #{tpu_custom_call.1} parent=11 // pred_fallthru
          _
        // Predicated region
        $region41: #{tpu_custom_call.1} parent=11 // pred_check
          %p391 = pneg %p275
        $region42: #{tpu_custom_call.1} parent=11 // pred_check_branch
          %393 = sbr.rel (%p391) target = $region44
        $region43: #{tpu_custom_call.1} parent=11 // pred_region
          _
        $region44: #{tpu_custom_call.1} parent=11 // pred_fallthru
          _
      $region12: #{tpu_custom_call.1} parent=5 // pred_fallthru
        _
      %p394 = scmp.lt.s32.totalorder %s29, 2
      // Predicated region
      $region45: #{tpu_custom_call.1} parent=5 // pred_check
        %p395 = pneg %p394
      $region46: #{tpu_custom_call.1} parent=5 // pred_check_branch
        %397 = sbr.rel (%p395) target = $region48
      $region47: #{tpu_custom_call.1} parent=5 // pred_region
        // Predicated region
        $region49: #{tpu_custom_call.1} parent=47 // pred_check
          %p398 = pneg %p49
        $region50: #{tpu_custom_call.1} parent=47 // pred_check_branch
          %400 = sbr.rel (%p398) target = $region52
        $region51: #{tpu_custom_call.1} parent=47 // pred_region
          %s401 = sand.u32 %s39, 1
          %s402 = scalar_lea.sflag [#allocation4], %s401
          %s403 = sand.u32 %s39, 1
          %s404 = smul.addr %s403, 8
          %s405 = scalar_lea.vmem [#allocation3], %s404
          %s407 = ssub.s32 128, 128
          %408 = vsyncadd %s402, %s407
          %s409 = smul.addr %s29, 128
          %s410 = scalar_lea.hbm %s0, %s409
          %s412 = sshll.u32 %s405, 4
          %s413 = int_to_ptr.vmem [resolvable:$true] %s412
          %415 = dma.hbm_to_vmem [thread:$0]  %s410, 128, %s413, %s402
        $region52: #{tpu_custom_call.1} parent=47 // pred_fallthru
          _
        // Predicated region
        $region53: #{tpu_custom_call.1} parent=47 // pred_check
          %p416 = pneg %p75
        $region54: #{tpu_custom_call.1} parent=47 // pred_check_branch
          %418 = sbr.rel (%p416) target = $region56
        $region55: #{tpu_custom_call.1} parent=47 // pred_region
          %s419 = sand.u32 %s29, 1
          %s420 = scalar_lea.sflag [#allocation7], %s419
          %s421 = sand.u32 %s65, 1
          %s422 = smul.addr %s421, 8
          %s423 = scalar_lea.vmem [#allocation6], %s422
          %s425 = ssub.s32 128, 128
          %426 = vsyncadd %s420, %s425
          %s427 = smul.addr %s29, 128
          %s428 = scalar_lea.hbm %s1, %s427
          %s430 = sshll.u32 %s423, 4
          %s431 = int_to_ptr.vmem [resolvable:$true] %s430
          %433 = dma.hbm_to_vmem [thread:$0]  %s428, 128, %s431, %s420
        $region56: #{tpu_custom_call.1} parent=47 // pred_fallthru
          _
        // Predicated region
        $region57: #{tpu_custom_call.1} parent=47 // pred_check
          %p434 = pneg %p101
        $region58: #{tpu_custom_call.1} parent=47 // pred_check_branch
          %436 = sbr.rel (%p434) target = $region60
        $region59: #{tpu_custom_call.1} parent=47 // pred_region
          %s437 = sand.u32 %s29, 1
          %s438 = scalar_lea.sflag [#allocation7], %s437
          %s439 = sand.u32 %s91, 1
          %s440 = smul.addr %s439, 8
          %s441 = scalar_lea.vmem [#allocation8], %s440
          %s443 = ssub.s32 128, 128
          %444 = vsyncadd %s438, %s443
          %s445 = smul.addr %s29, 128
          %s446 = scalar_lea.hbm %s2, %s445
          %s448 = sshll.u32 %s441, 4
          %s449 = int_to_ptr.vmem [resolvable:$true] %s448
          %451 = dma.hbm_to_vmem [thread:$0]  %s446, 128, %s449, %s438
        $region60: #{tpu_custom_call.1} parent=47 // pred_fallthru
          _
      $region48: #{tpu_custom_call.1} parent=5 // pred_fallthru
        _
      %p452 = scmp.le.s32.totalorder 1, %s29
      %p453 = scmp.lt.s32.totalorder %s29, 3
      %p454 = pnand %p452, %p453
      %p455 = pneg %p454
      // Predicated region
      $region61: #{tpu_custom_call.1} parent=5 // pred_check
        _
      $region62: #{tpu_custom_call.1} parent=5 // pred_check_branch
        %457 = sbr.rel (%p454) target = $region64
      $region63: #{tpu_custom_call.1} parent=5 // pred_region
        %s458 = ssub.s32 %s29, 1
        %s459 = sand.u32 %s42, 1
        %s460 = scalar_lea.sflag [#allocation4], %s459
        %s461 = sand.u32 %s42, 1
        %s462 = smul.addr %s461, 8
        %s463 = scalar_lea.vmem [#allocation3], %s462
        // Predicated region
        $region65: #{tpu_custom_call.1} parent=63 // pred_check
          %p464 = pneg %p55
        $region66: #{tpu_custom_call.1} parent=63 // pred_check_branch
          %466 = sbr.rel (%p464) target = $region68
        $region67: #{tpu_custom_call.1} parent=63 // pred_region
          %467 = dma.done %s460, 128
        $region68: #{tpu_custom_call.1} parent=63 // pred_fallthru
          _
        %s468 = sand.u32 %s34, 1
        %s469 = scalar_lea.sflag [#allocation7], %s468
        %s470 = sand.u32 %s68, 1
        %s471 = smul.addr %s470, 8
        %s472 = scalar_lea.vmem [#allocation6], %s471
        // Predicated region
        $region69: #{tpu_custom_call.1} parent=63 // pred_check
          %p473 = pneg %p81
        $region70: #{tpu_custom_call.1} parent=63 // pred_check_branch
          %475 = sbr.rel (%p473) target = $region72
        $region71: #{tpu_custom_call.1} parent=63 // pred_region
          %476 = dma.done %s469, 128
        $region72: #{tpu_custom_call.1} parent=63 // pred_fallthru
          _
        %s477 = sand.u32 %s34, 1
        %s478 = scalar_lea.sflag [#allocation7], %s477
        %s479 = sand.u32 %s94, 1
        %s480 = smul.addr %s479, 8
        %s481 = scalar_lea.vmem [#allocation8], %s480
        // Predicated region
        $region73: #{tpu_custom_call.1} parent=63 // pred_check
          %p482 = pneg %p107
        $region74: #{tpu_custom_call.1} parent=63 // pred_check_branch
          %484 = sbr.rel (%p482) target = $region76
        $region75: #{tpu_custom_call.1} parent=63 // pred_region
          %485 = dma.done %s478, 128
        $region76: #{tpu_custom_call.1} parent=63 // pred_fallthru
          _
        // Predicated region
        $region77: #{tpu_custom_call.1} parent=63 // pred_check
          %p486 = pneg %p128
        $region78: #{tpu_custom_call.1} parent=63 // pred_check_branch
          %488 = sbr.rel (%p486) target = $region80
        $region79: #{tpu_custom_call.1} parent=63 // pred_region
          %489 = dma.done [#allocation10], 256
        $region80: #{tpu_custom_call.1} parent=63 // pred_fallthru
          _
        // Predicated region
        $region81: #{tpu_custom_call.1} parent=63 // pred_check
          %p490 = pneg %p149
        $region82: #{tpu_custom_call.1} parent=63 // pred_check_branch
          %492 = sbr.rel (%p490) target = $region84
        $region83: #{tpu_custom_call.1} parent=63 // pred_region
          %493 = dma.done [#allocation10], 16
        $region84: #{tpu_custom_call.1} parent=63 // pred_fallthru
          _
        // Predicated region
        $region85: #{tpu_custom_call.1} parent=63 // pred_check
          %p494 = pneg %p170
        $region86: #{tpu_custom_call.1} parent=63 // pred_check_branch
          %496 = sbr.rel (%p494) target = $region88
        $region87: #{tpu_custom_call.1} parent=63 // pred_region
          %497 = dma.done [#allocation13], 256
        $region88: #{tpu_custom_call.1} parent=63 // pred_fallthru
          _
        // Predicated region
        $region89: #{tpu_custom_call.1} parent=63 // pred_check
          %p498 = pneg %p191
        $region90: #{tpu_custom_call.1} parent=63 // pred_check_branch
          %500 = sbr.rel (%p498) target = $region92
        $region91: #{tpu_custom_call.1} parent=63 // pred_region
          %501 = dma.done [#allocation13], 16
        $region92: #{tpu_custom_call.1} parent=63 // pred_fallthru
          _
        // Predicated region
        $region93: #{tpu_custom_call.1} parent=63 // pred_check
          %p502 = pneg %p212
        $region94: #{tpu_custom_call.1} parent=63 // pred_check_branch
          %504 = sbr.rel (%p502) target = $region96
        $region95: #{tpu_custom_call.1} parent=63 // pred_region
          %505 = dma.done [#allocation16], 256
        $region96: #{tpu_custom_call.1} parent=63 // pred_fallthru
          _
        // Predicated region
        $region97: #{tpu_custom_call.1} parent=63 // pred_check
          %p506 = pneg %p233
        $region98: #{tpu_custom_call.1} parent=63 // pred_check_branch
          %508 = sbr.rel (%p506) target = $region100
        $region99: #{tpu_custom_call.1} parent=63 // pred_region
          %509 = dma.done [#allocation16], 16
        $region100: #{tpu_custom_call.1} parent=63 // pred_fallthru
          _
        %s510 = sand.u32 %s42, 1
        %s511 = scalar_lea.sflag [#allocation4], %s510
        %s512 = sand.u32 %s42, 1
        %s513 = smul.addr %s512, 8
        %s514 = scalar_lea.vmem [#allocation3], %s513
        %p515 = pneg %p55
        %p516 = pneg %p52
        %s517 = sand.u32 %s34, 1
        %s518 = scalar_lea.sflag [#allocation7], %s517
        %s519 = sand.u32 %s68, 1
        %s520 = smul.addr %s519, 8
        %s521 = scalar_lea.vmem [#allocation6], %s520
        %p522 = pneg %p81
        %p523 = pneg %p78
        %s524 = sand.u32 %s34, 1
        %s525 = scalar_lea.sflag [#allocation7], %s524
        %s526 = sand.u32 %s94, 1
        %s527 = smul.addr %s526, 8
        %s528 = scalar_lea.vmem [#allocation8], %s527
        %p529 = pneg %p107
        %p530 = pneg %p104
        %p531 = pneg %p128
        %p532 = pneg %p125
        %p533 = pneg %p149
        %p534 = pneg %p146
        %p535 = pneg %p170
        %p536 = pneg %p167
        %p537 = pneg %p191
        %p538 = pneg %p188
        %p539 = pneg %p212
        %p540 = pneg %p209
        %p541 = pneg %p233
        %p542 = pneg %p230
        %p543 = pneg %p254
        %p544 = pneg %p251
        %p545 = pneg %p275
        %p546 = pneg %p272
        %p547 = pneg %p301
        %p548 = pneg %p298
        %s549 = sand.u32 %s288, 1
        %s550 = scalar_lea.sflag [#allocation5], %s549
        %s551 = sand.u32 %s288, 1
        %s552 = smul.addr %s551, 8
        %s553 = scalar_lea.vmem [#allocation18], %s552
        %v555 = vld [vmem:[%s463] sm:$0xff]
        %v556 = vpack.c.bf16 %v555, %v555
        %v557 = vld [vmem:[%s472] sm:$0xff]
        %v558 = vpack.c.bf16 %v557, %v557
        %v559 = vld [vmem:[%s481] sm:$0xff]
        %v560 = vpack.c.bf16 %v559, %v559
        %v561 = vld [vmem:[#allocation9] sm:$0xf]
        %v562 = vld [vmem:[#allocation9 + $0x4] sm:$0xf]
        %v563 = vld [vmem:[#allocation9 + $0x8] sm:$0xf]
        %v564 = vld [vmem:[#allocation9 + $0xc] sm:$0xf]
        %v565 = vld [vmem:[#allocation11] sm:$0x1]
        %v567 = vlaneseq
        %v568 = vshrl.u32 %v567, 7
        %v569 = vsub.s32 0, %v568
        %v570 = vrot.slane %v565, %v569
        %v576 = vunpack.c.l.b16 %v561
        %v577 = vunpack.c.l.b16 %v562
        %v578 = vunpack.c.l.b16 %v563
        %v579 = vunpack.c.l.b16 %v564
        %v580 = vpack.c.b16 %v577, %v576
        %v581 = vpack.c.b16 %v579, %v578
        %vm584 = vcmask 261120
        %v586 = vsel %vm584, %v556, 0
        %588 = vmatprep.subr.bf16.mxu0 0
        %589 = vmatpush1.bf16.msra.mxu0 0
        %590 = vmatprep.subr.bf16.mxu0 0
        %591 = vmatpush1.bf16.msra.mxu0 0
        %592 = vmatprep.subr.bf16.mxu0 0
        %593 = vmatpush1.bf16.msra.mxu0 0
        %594 = vmatprep.subr.bf16.mxu0 0
        %595 = vmatpush1.bf16.msra.mxu0 0
        %596 = vmatprep.subr.bf16.mxu0 0
        %597 = vmatpush1.bf16.msra.mxu0 0
        %598 = vmatprep.subr.bf16.mxu0 0
        %599 = vmatpush1.bf16.msra.mxu0 0
        %600 = vmatprep.subr.bf16.mxu0 0
        %601 = vmatpush1.bf16.msra.mxu0 %v581
        %602 = vmatprep.subr.bf16.mxu0 0
        %603 = vmatpush1.bf16.msra.mxu0 %v580
        %604 = vmatprep.subr.bf16.mxu0 0
        %605 = vmatpush2.bf16.msra.mxu0 0
        %606 = vmatprep.subr.bf16.mxu0 0
        %607 = vmatpush2.bf16.msra.mxu0 0
        %608 = vmatprep.subr.bf16.mxu0 0
        %609 = vmatpush2.bf16.msra.mxu0 0
        %610 = vmatprep.subr.bf16.mxu0 0
        %611 = vmatpush2.bf16.msra.mxu0 0
        %612 = vmatprep.subr.bf16.mxu0 0
        %613 = vmatpush2.bf16.msra.mxu0 0
        %614 = vmatprep.subr.bf16.mxu0 0
        %615 = vmatpush2.bf16.msra.mxu0 0
        %616 = vmatprep.subr.bf16.mxu0 0
        %617 = vmatpush2.bf16.msra.mxu0 0
        %618 = vmatprep.subr.bf16.mxu0 0
        %619 = vmatpush2.bf16.msra.mxu0 0
        %620 = vmatprep.mubr.bf16.mxu0 0
        %621 = vmatmul.mubr.bf16.gmra.mxu0 %v586
        %v622 = vpop.f32.mrf.mxu0
        %v623 = vadd.f32 %v570, %v622
        %v624 = vpop.f32.mrf.mxu0
        %v625 = vpop.f32.mrf.mxu0
        %v626 = vpop.f32.mrf.mxu0
        %627 = vdwg.mxu0
        %v628 = vld [vmem:[#allocation12] sm:$0xf]
        %v629 = vld [vmem:[#allocation12 + $0x4] sm:$0xf]
        %v630 = vld [vmem:[#allocation12 + $0x8] sm:$0xf]
        %v631 = vld [vmem:[#allocation12 + $0xc] sm:$0xf]
        %v632 = vld [vmem:[#allocation14] sm:$0x1]
        %v634 = vlaneseq
        %v635 = vshrl.u32 %v634, 7
        %v636 = vsub.s32 0, %v635
        %v637 = vrot.slane %v632, %v636
        %v643 = vunpack.c.l.b16 %v628
        %v644 = vunpack.c.l.b16 %v629
        %v645 = vunpack.c.l.b16 %v630
        %v646 = vunpack.c.l.b16 %v631
        %v647 = vpack.c.b16 %v644, %v643
        %v648 = vpack.c.b16 %v646, %v645
        %v652 = vsel %vm584, %v558, 0
        %654 = vmatprep.subr.bf16.mxu0 0
        %655 = vmatpush1.bf16.msra.mxu0 0
        %656 = vmatprep.subr.bf16.mxu0 0
        %657 = vmatpush1.bf16.msra.mxu0 0
        %658 = vmatprep.subr.bf16.mxu0 0
        %659 = vmatpush1.bf16.msra.mxu0 0
        %660 = vmatprep.subr.bf16.mxu0 0
        %661 = vmatpush1.bf16.msra.mxu0 0
        %662 = vmatprep.subr.bf16.mxu0 0
        %663 = vmatpush1.bf16.msra.mxu0 0
        %664 = vmatprep.subr.bf16.mxu0 0
        %665 = vmatpush1.bf16.msra.mxu0 0
        %666 = vmatprep.subr.bf16.mxu0 0
        %667 = vmatpush1.bf16.msra.mxu0 %v648
        %668 = vmatprep.subr.bf16.mxu0 0
        %669 = vmatpush1.bf16.msra.mxu0 %v647
        %670 = vmatprep.subr.bf16.mxu0 0
        %671 = vmatpush2.bf16.msra.mxu0 0
        %672 = vmatprep.subr.bf16.mxu0 0
        %673 = vmatpush2.bf16.msra.mxu0 0
        %674 = vmatprep.subr.bf16.mxu0 0
        %675 = vmatpush2.bf16.msra.mxu0 0
        %676 = vmatprep.subr.bf16.mxu0 0
        %677 = vmatpush2.bf16.msra.mxu0 0
        %678 = vmatprep.subr.bf16.mxu0 0
        %679 = vmatpush2.bf16.msra.mxu0 0
        %680 = vmatprep.subr.bf16.mxu0 0
        %681 = vmatpush2.bf16.msra.mxu0 0
        %682 = vmatprep.subr.bf16.mxu0 0
        %683 = vmatpush2.bf16.msra.mxu0 0
        %684 = vmatprep.subr.bf16.mxu0 0
        %685 = vmatpush2.bf16.msra.mxu0 0
        %686 = vmatprep.mubr.bf16.mxu0 0
        %687 = vmatmul.mubr.bf16.gmra.mxu0 %v652
        %v688 = vpop.f32.mrf.mxu0
        %v689 = vadd.f32 %v637, %v688
        %v690 = vpop.f32.mrf.mxu0
        %v691 = vpop.f32.mrf.mxu0
        %v692 = vpop.f32.mrf.mxu0
        %693 = vdwg.mxu0
        %v694 = vld [vmem:[#allocation15] sm:$0xf]
        %v695 = vld [vmem:[#allocation15 + $0x4] sm:$0xf]
        %v696 = vld [vmem:[#allocation15 + $0x8] sm:$0xf]
        %v697 = vld [vmem:[#allocation15 + $0xc] sm:$0xf]
        %v698 = vld [vmem:[#allocation17] sm:$0x1]
        %v700 = vlaneseq
        %v701 = vshrl.u32 %v700, 7
        %v702 = vsub.s32 0, %v701
        %v703 = vrot.slane %v698, %v702
        %v709 = vunpack.c.l.b16 %v694
        %v710 = vunpack.c.l.b16 %v695
        %v711 = vunpack.c.l.b16 %v696
        %v712 = vunpack.c.l.b16 %v697
        %v713 = vpack.c.b16 %v710, %v709
        %v714 = vpack.c.b16 %v712, %v711
        %v718 = vsel %vm584, %v560, 0
        %720 = vmatprep.subr.bf16.mxu0 0
        %721 = vmatpush1.bf16.msra.mxu0 0
        %722 = vmatprep.subr.bf16.mxu0 0
        %723 = vmatpush1.bf16.msra.mxu0 0
        %724 = vmatprep.subr.bf16.mxu0 0
        %725 = vmatpush1.bf16.msra.mxu0 0
        %726 = vmatprep.subr.bf16.mxu0 0
        %727 = vmatpush1.bf16.msra.mxu0 0
        %728 = vmatprep.subr.bf16.mxu0 0
        %729 = vmatpush1.bf16.msra.mxu0 0
        %730 = vmatprep.subr.bf16.mxu0 0
        %731 = vmatpush1.bf16.msra.mxu0 0
        %732 = vmatprep.subr.bf16.mxu0 0
        %733 = vmatpush1.bf16.msra.mxu0 %v714
        %734 = vmatprep.subr.bf16.mxu0 0
        %735 = vmatpush1.bf16.msra.mxu0 %v713
        %736 = vmatprep.subr.bf16.mxu0 0
        %737 = vmatpush2.bf16.msra.mxu0 0
        %738 = vmatprep.subr.bf16.mxu0 0
        %739 = vmatpush2.bf16.msra.mxu0 0
        %740 = vmatprep.subr.bf16.mxu0 0
        %741 = vmatpush2.bf16.msra.mxu0 0
        %742 = vmatprep.subr.bf16.mxu0 0
        %743 = vmatpush2.bf16.msra.mxu0 0
        %744 = vmatprep.subr.bf16.mxu0 0
        %745 = vmatpush2.bf16.msra.mxu0 0
        %746 = vmatprep.subr.bf16.mxu0 0
        %747 = vmatpush2.bf16.msra.mxu0 0
        %748 = vmatprep.subr.bf16.mxu0 0
        %749 = vmatpush2.bf16.msra.mxu0 0
        %750 = vmatprep.subr.bf16.mxu0 0
        %751 = vmatpush2.bf16.msra.mxu0 0
        %752 = vmatprep.mubr.bf16.mxu0 0
        %753 = vmatmul.mubr.bf16.gmra.mxu0 %v718
        %v754 = vpop.f32.mrf.mxu0
        %v755 = vadd.f32 %v703, %v754
        %v756 = vpop.f32.mrf.mxu0
        %v757 = vpop.f32.mrf.mxu0
        %v758 = vpop.f32.mrf.mxu0
        %759 = vdwg.mxu0
        %v760 = vpack.c.bf16 %v623, %v623
        %v761 = vpack.c.bf16 %v689, %v689
        %v762 = vpack.c.bf16 %v755, %v755
        %vm763 = vcmask 64512
        %v765 = vsel %vm763, %v760, 0
        %v768 = vsel %vm763, %v761, 0
        %770 = vmatprep.subr.bf16.mxu0 0
        %771 = vmatpush1.bf16.xpose.msra.mxu0 0
        %772 = vmatprep.subr.bf16.mxu0 0
        %773 = vmatpush1.bf16.xpose.msra.mxu0 0
        %774 = vmatprep.subr.bf16.mxu0 0
        %775 = vmatpush1.bf16.xpose.msra.mxu0 0
        %776 = vmatprep.subr.bf16.mxu0 0
        %777 = vmatpush1.bf16.xpose.msra.mxu0 0
        %778 = vmatprep.subr.bf16.mxu0 0
        %779 = vmatpush1.bf16.xpose.msra.mxu0 0
        %780 = vmatprep.subr.bf16.mxu0 0
        %781 = vmatpush1.bf16.xpose.msra.mxu0 0
        %782 = vmatprep.subr.bf16.mxu0 0
        %783 = vmatpush1.bf16.xpose.msra.mxu0 0
        %784 = vmatprep.subr.bf16.mxu0 0
        %785 = vmatpush1.bf16.xpose.msra.mxu0 %v768
        %786 = vmatprep.subr.bf16.mxu0 0
        %787 = vmatpush2.bf16.xpose.msra.mxu0 0
        %788 = vmatprep.subr.bf16.mxu0 0
        %789 = vmatpush2.bf16.xpose.msra.mxu0 0
        %790 = vmatprep.subr.bf16.mxu0 0
        %791 = vmatpush2.bf16.xpose.msra.mxu0 0
        %792 = vmatprep.subr.bf16.mxu0 0
        %793 = vmatpush2.bf16.xpose.msra.mxu0 0
        %794 = vmatprep.subr.bf16.mxu0 0
        %795 = vmatpush2.bf16.xpose.msra.mxu0 0
        %796 = vmatprep.subr.bf16.mxu0 0
        %797 = vmatpush2.bf16.xpose.msra.mxu0 0
        %798 = vmatprep.subr.bf16.mxu0 0
        %799 = vmatpush2.bf16.xpose.msra.mxu0 0
        %800 = vmatprep.subr.bf16.mxu0 0
        %801 = vmatpush2.bf16.xpose.msra.mxu0 0
        %802 = vmatprep.mubr.bf16.mxu0 0
        %803 = vmatmul.mubr.bf16.gmra.mxu0 %v765
        %v804 = vpop.f32.mrf.mxu0
        %v805 = vadd.f32 0.0, %v804
        %v806 = vpop.f32.mrf.mxu0
        %v807 = vpop.f32.mrf.mxu0
        %v808 = vpop.f32.mrf.mxu0
        %809 = vdwg.mxu0
        %v810 = vsel %vm763, %v805, -inf
        %811 = vmax.xlane.f32.xlu0 %v810
        %v812 = vpop.xlane.xlu0 %811
        %v813 = vsub.f32 %v805, %v812
        %v814 = vmul.f32 %v813, 1.442695
        %v815 = vpow.pop %v814
        %v816 = vsel %vm763, %v815, 0.0
        %817 = vadd.xlane.f32.xlu0 %v816
        %v818 = vpop.xlane.xlu0 %817
        %v819 = vrcp.pop %v818
        %v820 = vmul.f32 %v815, %v819
        %v821 = vpack.c.bf16 %v820, %v820
        %v823 = vsel %vm763, %v821, 0
        %vm825 = vcmask 1043456
        %v827 = vsel %vm825, %v762, 0
        %829 = vmatprep.subr.bf16.mxu0 0
        %830 = vmatpush1.bf16.msra.mxu0 0
        %831 = vmatprep.subr.bf16.mxu0 0
        %832 = vmatpush1.bf16.msra.mxu0 0
        %833 = vmatprep.subr.bf16.mxu0 0
        %834 = vmatpush1.bf16.msra.mxu0 0
        %835 = vmatprep.subr.bf16.mxu0 0
        %836 = vmatpush1.bf16.msra.mxu0 0
        %837 = vmatprep.subr.bf16.mxu0 0
        %838 = vmatpush1.bf16.msra.mxu0 0
        %839 = vmatprep.subr.bf16.mxu0 0
        %840 = vmatpush1.bf16.msra.mxu0 0
        %841 = vmatprep.subr.bf16.mxu0 0
        %842 = vmatpush1.bf16.msra.mxu0 0
        %843 = vmatprep.subr.bf16.mxu0 0
        %844 = vmatpush1.bf16.msra.mxu0 %v827
        %845 = vmatprep.subr.bf16.mxu0 0
        %846 = vmatpush2.bf16.msra.mxu0 0
        %847 = vmatprep.subr.bf16.mxu0 0
        %848 = vmatpush2.bf16.msra.mxu0 0
        %849 = vmatprep.subr.bf16.mxu0 0
        %850 = vmatpush2.bf16.msra.mxu0 0
        %851 = vmatprep.subr.bf16.mxu0 0
        %852 = vmatpush2.bf16.msra.mxu0 0
        %853 = vmatprep.subr.bf16.mxu0 0
        %854 = vmatpush2.bf16.msra.mxu0 0
        %855 = vmatprep.subr.bf16.mxu0 0
        %856 = vmatpush2.bf16.msra.mxu0 0
        %857 = vmatprep.subr.bf16.mxu0 0
        %858 = vmatpush2.bf16.msra.mxu0 0
        %859 = vmatprep.subr.bf16.mxu0 0
        %860 = vmatpush2.bf16.msra.mxu0 0
        %861 = vmatprep.mubr.bf16.mxu0 0
        %862 = vmatmul.mubr.bf16.gmra.mxu0 %v823
        %v863 = vpop.f32.mrf.mxu0
        %v864 = vadd.f32 0.0, %v863
        %v865 = vpop.f32.mrf.mxu0
        %v866 = vpop.f32.mrf.mxu0
        %v867 = vpop.f32.mrf.mxu0
        %868 = vdwg.mxu0
        %869 = vst.msk [vmem:[#allocation2] sm:$0xff] %vm763, %v864
        %871 = vrot.lane.b32.xlu0 %v760, 120
        %v872 = vpop.permute.xlu0 %871
        %874 = vrot.lane.b32.xlu0 %v761, 120
        %v875 = vpop.permute.xlu0 %874
        %v877 = vsel %vm763, %v872, 0
        %v880 = vsel %vm763, %v875, 0
        %882 = vmatprep.subr.bf16.mxu0 0
        %883 = vmatpush1.bf16.xpose.msra.mxu0 0
        %884 = vmatprep.subr.bf16.mxu0 0
        %885 = vmatpush1.bf16.xpose.msra.mxu0 0
        %886 = vmatprep.subr.bf16.mxu0 0
        %887 = vmatpush1.bf16.xpose.msra.mxu0 0
        %888 = vmatprep.subr.bf16.mxu0 0
        %889 = vmatpush1.bf16.xpose.msra.mxu0 0
        %890 = vmatprep.subr.bf16.mxu0 0
        %891 = vmatpush1.bf16.xpose.msra.mxu0 0
        %892 = vmatprep.subr.bf16.mxu0 0
        %893 = vmatpush1.bf16.xpose.msra.mxu0 0
        %894 = vmatprep.subr.bf16.mxu0 0
        %895 = vmatpush1.bf16.xpose.msra.mxu0 0
        %896 = vmatprep.subr.bf16.mxu0 0
        %897 = vmatpush1.bf16.xpose.msra.mxu0 %v880
        %898 = vmatprep.subr.bf16.mxu0 0
        %899 = vmatpush2.bf16.xpose.msra.mxu0 0
        %900 = vmatprep.subr.bf16.mxu0 0
        %901 = vmatpush2.bf16.xpose.msra.mxu0 0
        %902 = vmatprep.subr.bf16.mxu0 0
        %903 = vmatpush2.bf16.xpose.msra.mxu0 0
        %904 = vmatprep.subr.bf16.mxu0 0
        %905 = vmatpush2.bf16.xpose.msra.mxu0 0
        %906 = vmatprep.subr.bf16.mxu0 0
        %907 = vmatpush2.bf16.xpose.msra.mxu0 0
        %908 = vmatprep.subr.bf16.mxu0 0
        %909 = vmatpush2.bf16.xpose.msra.mxu0 0
        %910 = vmatprep.subr.bf16.mxu0 0
        %911 = vmatpush2.bf16.xpose.msra.mxu0 0
        %912 = vmatprep.subr.bf16.mxu0 0
        %913 = vmatpush2.bf16.xpose.msra.mxu0 0
        %914 = vmatprep.mubr.bf16.mxu0 0
        %915 = vmatmul.mubr.bf16.gmra.mxu0 %v877
        %v916 = vpop.f32.mrf.mxu0
        %v917 = vadd.f32 0.0, %v916
        %v918 = vpop.f32.mrf.mxu0
        %v919 = vpop.f32.mrf.mxu0
        %v920 = vpop.f32.mrf.mxu0
        %921 = vdwg.mxu0
        %v922 = vsel %vm763, %v917, -inf
        %923 = vmax.xlane.f32.xlu0 %v922
        %v924 = vpop.xlane.xlu0 %923
        %v925 = vsub.f32 %v917, %v924
        %v926 = vmul.f32 %v925, 1.442695
        %v927 = vpow.pop %v926
        %v928 = vsel %vm763, %v927, 0.0
        %929 = vadd.xlane.f32.xlu0 %v928
        %v930 = vpop.xlane.xlu0 %929
        %v931 = vrcp.pop %v930
        %v932 = vmul.f32 %v927, %v931
        %v933 = vpack.c.bf16 %v932, %v932
        %935 = vrot.lane.b32.xlu0 %v762, 120
        %v936 = vpop.permute.xlu0 %935
        %v938 = vsel %vm763, %v933, 0
        %v941 = vsel %vm825, %v936, 0
        %943 = vmatprep.subr.bf16.mxu0 0
        %944 = vmatpush1.bf16.msra.mxu0 0
        %945 = vmatprep.subr.bf16.mxu0 0
        %946 = vmatpush1.bf16.msra.mxu0 0
        %947 = vmatprep.subr.bf16.mxu0 0
        %948 = vmatpush1.bf16.msra.mxu0 0
        %949 = vmatprep.subr.bf16.mxu0 0
        %950 = vmatpush1.bf16.msra.mxu0 0
        %951 = vmatprep.subr.bf16.mxu0 0
        %952 = vmatpush1.bf16.msra.mxu0 0
        %953 = vmatprep.subr.bf16.mxu0 0
        %954 = vmatpush1.bf16.msra.mxu0 0
        %955 = vmatprep.subr.bf16.mxu0 0
        %956 = vmatpush1.bf16.msra.mxu0 0
        %957 = vmatprep.subr.bf16.mxu0 0
        %958 = vmatpush1.bf16.msra.mxu0 %v941
        %959 = vmatprep.subr.bf16.mxu0 0
        %960 = vmatpush2.bf16.msra.mxu0 0
        %961 = vmatprep.subr.bf16.mxu0 0
        %962 = vmatpush2.bf16.msra.mxu0 0
        %963 = vmatprep.subr.bf16.mxu0 0
        %964 = vmatpush2.bf16.msra.mxu0 0
        %965 = vmatprep.subr.bf16.mxu0 0
        %966 = vmatpush2.bf16.msra.mxu0 0
        %967 = vmatprep.subr.bf16.mxu0 0
        %968 = vmatpush2.bf16.msra.mxu0 0
        %969 = vmatprep.subr.bf16.mxu0 0
        %970 = vmatpush2.bf16.msra.mxu0 0
        %971 = vmatprep.subr.bf16.mxu0 0
        %972 = vmatpush2.bf16.msra.mxu0 0
        %973 = vmatprep.subr.bf16.mxu0 0
        %974 = vmatpush2.bf16.msra.mxu0 0
        %975 = vmatprep.mubr.bf16.mxu0 0
        %976 = vmatmul.mubr.bf16.gmra.mxu0 %v938
        %v977 = vpop.f32.mrf.mxu0
        %v978 = vadd.f32 0.0, %v977
        %v979 = vpop.f32.mrf.mxu0
        %v980 = vpop.f32.mrf.mxu0
        %v981 = vpop.f32.mrf.mxu0
        %982 = vdwg.mxu0
        %984 = vrot.lane.b32.xlu0 %v978, 8
        %v985 = vpop.permute.xlu0 %984
        %vm987 = vcmask 130112
        %988 = vst.msk [vmem:[#allocation2] sm:$0xff] %vm987, %v985
        %989 = vrot.lane.b32.xlu0 %v760, 112
        %v990 = vpop.permute.xlu0 %989
        %991 = vrot.lane.b32.xlu0 %v761, 112
        %v992 = vpop.permute.xlu0 %991
        %v994 = vsel %vm763, %v990, 0
        %v997 = vsel %vm763, %v992, 0
        %999 = vmatprep.subr.bf16.mxu0 0
        %1000 = vmatpush1.bf16.xpose.msra.mxu0 0
        %1001 = vmatprep.subr.bf16.mxu0 0
        %1002 = vmatpush1.bf16.xpose.msra.mxu0 0
        %1003 = vmatprep.subr.bf16.mxu0 0
        %1004 = vmatpush1.bf16.xpose.msra.mxu0 0
        %1005 = vmatprep.subr.bf16.mxu0 0
        %1006 = vmatpush1.bf16.xpose.msra.mxu0 0
        %1007 = vmatprep.subr.bf16.mxu0 0
        %1008 = vmatpush1.bf16.xpose.msra.mxu0 0
        %1009 = vmatprep.subr.bf16.mxu0 0
        %1010 = vmatpush1.bf16.xpose.msra.mxu0 0
        %1011 = vmatprep.subr.bf16.mxu0 0
        %1012 = vmatpush1.bf16.xpose.msra.mxu0 0
        %1013 = vmatprep.subr.bf16.mxu0 0
        %1014 = vmatpush1.bf16.xpose.msra.mxu0 %v997
        %1015 = vmatprep.subr.bf16.mxu0 0
        %1016 = vmatpush2.bf16.xpose.msra.mxu0 0
        %1017 = vmatprep.subr.bf16.mxu0 0
        %1018 = vmatpush2.bf16.xpose.msra.mxu0 0
        %1019 = vmatprep.subr.bf16.mxu0 0
        %1020 = vmatpush2.bf16.xpose.msra.mxu0 0
        %1021 = vmatprep.subr.bf16.mxu0 0
        %1022 = vmatpush2.bf16.xpose.msra.mxu0 0
        %1023 = vmatprep.subr.bf16.mxu0 0
        %1024 = vmatpush2.bf16.xpose.msra.mxu0 0
        %1025 = vmatprep.subr.bf16.mxu0 0
        %1026 = vmatpush2.bf16.xpose.msra.mxu0 0
        %1027 = vmatprep.subr.bf16.mxu0 0
        %1028 = vmatpush2.bf16.xpose.msra.mxu0 0
        %1029 = vmatprep.subr.bf16.mxu0 0
        %1030 = vmatpush2.bf16.xpose.msra.mxu0 0
        %1031 = vmatprep.mubr.bf16.mxu0 0
        %1032 = vmatmul.mubr.bf16.gmra.mxu0 %v994
        %v1033 = vpop.f32.mrf.mxu0
        %v1034 = vadd.f32 0.0, %v1033
        %v1035 = vpop.f32.mrf.mxu0
        %v1036 = vpop.f32.mrf.mxu0
        %v1037 = vpop.f32.mrf.mxu0
        %1038 = vdwg.mxu0
        %v1039 = vsel %vm763, %v1034, -inf
        %1040 = vmax.xlane.f32.xlu0 %v1039
        %v1041 = vpop.xlane.xlu0 %1040
        %v1042 = vsub.f32 %v1034, %v1041
        %v1043 = vmul.f32 %v1042, 1.442695
        %v1044 = vpow.pop %v1043
        %v1045 = vsel %vm763, %v1044, 0.0
        %1046 = vadd.xlane.f32.xlu0 %v1045
        %v1047 = vpop.xlane.xlu0 %1046
        %v1048 = vrcp.pop %v1047
        %v1049 = vmul.f32 %v1044, %v1048
        %v1050 = vpack.c.bf16 %v1049, %v1049
        %1051 = vrot.lane.b32.xlu0 %v762, 112
        %v1052 = vpop.permute.xlu0 %1051
        %v1054 = vsel %vm763, %v1050, 0
        %v1057 = vsel %vm825, %v1052, 0
        %1059 = vmatprep.subr.bf16.mxu0 0
        %1060 = vmatpush1.bf16.msra.mxu0 0
        %1061 = vmatprep.subr.bf16.mxu0 0
        %1062 = vmatpush1.bf16.msra.mxu0 0
        %1063 = vmatprep.subr.bf16.mxu0 0
        %1064 = vmatpush1.bf16.msra.mxu0 0
        %1065 = vmatprep.subr.bf16.mxu0 0
        %1066 = vmatpush1.bf16.msra.mxu0 0
        %1067 = vmatprep.subr.bf16.mxu0 0
        %1068 = vmatpush1.bf16.msra.mxu0 0
        %1069 = vmatprep.subr.bf16.mxu0 0
        %1070 = vmatpush1.bf16.msra.mxu0 0
        %1071 = vmatprep.subr.bf16.mxu0 0
        %1072 = vmatpush1.bf16.msra.mxu0 0
        %1073 = vmatprep.subr.bf16.mxu0 0
        %1074 = vmatpush1.bf16.msra.mxu0 %v1057
        %1075 = vmatprep.subr.bf16.mxu0 0
        %1076 = vmatpush2.bf16.msra.mxu0 0
        %1077 = vmatprep.subr.bf16.mxu0 0
        %1078 = vmatpush2.bf16.msra.mxu0 0
        %1079 = vmatprep.subr.bf16.mxu0 0
        %1080 = vmatpush2.bf16.msra.mxu0 0
        %1081 = vmatprep.subr.bf16.mxu0 0
        %1082 = vmatpush2.bf16.msra.mxu0 0
        %1083 = vmatprep.subr.bf16.mxu0 0
        %1084 = vmatpush2.bf16.msra.mxu0 0
        %1085 = vmatprep.subr.bf16.mxu0 0
        %1086 = vmatpush2.bf16.msra.mxu0 0
        %1087 = vmatprep.subr.bf16.mxu0 0
        %1088 = vmatpush2.bf16.msra.mxu0 0
        %1089 = vmatprep.subr.bf16.mxu0 0
        %1090 = vmatpush2.bf16.msra.mxu0 0
        %1091 = vmatprep.mubr.bf16.mxu0 0
        %1092 = vmatmul.mubr.bf16.gmra.mxu0 %v1054
        %v1093 = vpop.f32.mrf.mxu0
        %v1094 = vadd.f32 0.0, %v1093
        %v1095 = vpop.f32.mrf.mxu0
        %v1096 = vpop.f32.mrf.mxu0
        %v1097 = vpop.f32.mrf.mxu0
        %1098 = vdwg.mxu0
        %1100 = vrot.lane.b32.xlu0 %v1094, 16
        %v1101 = vpop.permute.xlu0 %1100
        %vm1103 = vcmask 195712
        %1104 = vst.msk [vmem:[#allocation2] sm:$0xff] %vm1103, %v1101
        %1105 = vrot.lane.b32.xlu0 %v760, 104
        %v1106 = vpop.permute.xlu0 %1105
        %1107 = vrot.lane.b32.xlu0 %v761, 104
        %v1108 = vpop.permute.xlu0 %1107
        %v1110 = vsel %vm763, %v1106, 0
        %v1113 = vsel %vm763, %v1108, 0
        %1115 = vmatprep.subr.bf16.mxu0 0
        %1116 = vmatpush1.bf16.xpose.msra.mxu0 0
        %1117 = vmatprep.subr.bf16.mxu0 0
        %1118 = vmatpush1.bf16.xpose.msra.mxu0 0
        %1119 = vmatprep.subr.bf16.mxu0 0
        %1120 = vmatpush1.bf16.xpose.msra.mxu0 0
        %1121 = vmatprep.subr.bf16.mxu0 0
        %1122 = vmatpush1.bf16.xpose.msra.mxu0 0
        %1123 = vmatprep.subr.bf16.mxu0 0
        %1124 = vmatpush1.bf16.xpose.msra.mxu0 0
        %1125 = vmatprep.subr.bf16.mxu0 0
        %1126 = vmatpush1.bf16.xpose.msra.mxu0 0
        %1127 = vmatprep.subr.bf16.mxu0 0
        %1128 = vmatpush1.bf16.xpose.msra.mxu0 0
        %1129 = vmatprep.subr.bf16.mxu0 0
        %1130 = vmatpush1.bf16.xpose.msra.mxu0 %v1113
        %1131 = vmatprep.subr.bf16.mxu0 0
        %1132 = vmatpush2.bf16.xpose.msra.mxu0 0
        %1133 = vmatprep.subr.bf16.mxu0 0
        %1134 = vmatpush2.bf16.xpose.msra.mxu0 0
        %1135 = vmatprep.subr.bf16.mxu0 0
        %1136 = vmatpush2.bf16.xpose.msra.mxu0 0
        %1137 = vmatprep.subr.bf16.mxu0 0
        %1138 = vmatpush2.bf16.xpose.msra.mxu0 0
        %1139 = vmatprep.subr.bf16.mxu0 0
        %1140 = vmatpush2.bf16.xpose.msra.mxu0 0
        %1141 = vmatprep.subr.bf16.mxu0 0
        %1142 = vmatpush2.bf16.xpose.msra.mxu0 0
        %1143 = vmatprep.subr.bf16.mxu0 0
        %1144 = vmatpush2.bf16.xpose.msra.mxu0 0
        %1145 = vmatprep.subr.bf16.mxu0 0
        %1146 = vmatpush2.bf16.xpose.msra.mxu0 0
        %1147 = vmatprep.mubr.bf16.mxu0 0
        %1148 = vmatmul.mubr.bf16.gmra.mxu0 %v1110
        %v1149 = vpop.f32.mrf.mxu0
        %v1150 = vadd.f32 0.0, %v1149
        %v1151 = vpop.f32.mrf.mxu0
        %v1152 = vpop.f32.mrf.mxu0
        %v1153 = vpop.f32.mrf.mxu0
        %1154 = vdwg.mxu0
        %v1155 = vsel %vm763, %v1150, -inf
        %1156 = vmax.xlane.f32.xlu0 %v1155
        %v1157 = vpop.xlane.xlu0 %1156
        %v1158 = vsub.f32 %v1150, %v1157
        %v1159 = vmul.f32 %v1158, 1.442695
        %v1160 = vpow.pop %v1159
        %v1161 = vsel %vm763, %v1160, 0.0
        %1162 = vadd.xlane.f32.xlu0 %v1161
        %v1163 = vpop.xlane.xlu0 %1162
        %v1164 = vrcp.pop %v1163
        %v1165 = vmul.f32 %v1160, %v1164
        %v1166 = vpack.c.bf16 %v1165, %v1165
        %1167 = vrot.lane.b32.xlu0 %v762, 104
        %v1168 = vpop.permute.xlu0 %1167
        %v1170 = vsel %vm763, %v1166, 0
        %v1173 = vsel %vm825, %v1168, 0
        %1175 = vmatprep.subr.bf16.mxu0 0
        %1176 = vmatpush1.bf16.msra.mxu0 0
        %1177 = vmatprep.subr.bf16.mxu0 0
        %1178 = vmatpush1.bf16.msra.mxu0 0
        %1179 = vmatprep.subr.bf16.mxu0 0
        %1180 = vmatpush1.bf16.msra.mxu0 0
        %1181 = vmatprep.subr.bf16.mxu0 0
        %1182 = vmatpush1.bf16.msra.mxu0 0
        %1183 = vmatprep.subr.bf16.mxu0 0
        %1184 = vmatpush1.bf16.msra.mxu0 0
        %1185 = vmatprep.subr.bf16.mxu0 0
        %1186 = vmatpush1.bf16.msra.mxu0 0
        %1187 = vmatprep.subr.bf16.mxu0 0
        %1188 = vmatpush1.bf16.msra.mxu0 0
        %1189 = vmatprep.subr.bf16.mxu0 0
        %1190 = vmatpush1.bf16.msra.mxu0 %v1173
        %1191 = vmatprep.subr.bf16.mxu0 0
        %1192 = vmatpush2.bf16.msra.mxu0 0
        %1193 = vmatprep.subr.bf16.mxu0 0
        %1194 = vmatpush2.bf16.msra.mxu0 0
        %1195 = vmatprep.subr.bf16.mxu0 0
        %1196 = vmatpush2.bf16.msra.mxu0 0
        %1197 = vmatprep.subr.bf16.mxu0 0
        %1198 = vmatpush2.bf16.msra.mxu0 0
        %1199 = vmatprep.subr.bf16.mxu0 0
        %1200 = vmatpush2.bf16.msra.mxu0 0
        %1201 = vmatprep.subr.bf16.mxu0 0
        %1202 = vmatpush2.bf16.msra.mxu0 0
        %1203 = vmatprep.subr.bf16.mxu0 0
        %1204 = vmatpush2.bf16.msra.mxu0 0
        %1205 = vmatprep.subr.bf16.mxu0 0
        %1206 = vmatpush2.bf16.msra.mxu0 0
        %1207 = vmatprep.mubr.bf16.mxu0 0
        %1208 = vmatmul.mubr.bf16.gmra.mxu0 %v1170
        %v1209 = vpop.f32.mrf.mxu0
        %v1210 = vadd.f32 0.0, %v1209
        %v1211 = vpop.f32.mrf.mxu0
        %v1212 = vpop.f32.mrf.mxu0
        %v1213 = vpop.f32.mrf.mxu0
        %1214 = vdwg.mxu0
        %1216 = vrot.lane.b32.xlu0 %v1210, 24
        %v1217 = vpop.permute.xlu0 %1216
        %vm1219 = vcmask 261312
        %1220 = vst.msk [vmem:[#allocation2] sm:$0xff] %vm1219, %v1217
        %v1221 = vld [vmem:[#allocation2] sm:$0xff]
        %v1222 = vpack.c.bf16 %v1221, %v1221
        %v1223 = vld [vmem:[%s9] sm:$0xf]
        %v1224 = vld [vmem:[%s9 + $0x4] sm:$0xf]
        %v1225 = vld [vmem:[%s9 + $0x8] sm:$0xf]
        %v1226 = vld [vmem:[%s9 + $0xc] sm:$0xf]
        %v1227 = vld [vmem:[%s10] sm:$0x1]
        %v1229 = vlaneseq
        %v1230 = vshrl.u32 %v1229, 7
        %v1231 = vsub.s32 0, %v1230
        %v1232 = vrot.slane %v1227, %v1231
        %v1238 = vunpack.c.l.b16 %v1223
        %v1239 = vunpack.c.l.b16 %v1224
        %v1240 = vunpack.c.l.b16 %v1225
        %v1241 = vunpack.c.l.b16 %v1226
        %v1242 = vpack.c.b16 %v1239, %v1238
        %v1243 = vpack.c.b16 %v1241, %v1240
        %v1247 = vsel %vm584, %v1222, 0
        %1249 = vmatprep.subr.bf16.mxu0 0
        %1250 = vmatpush1.bf16.msra.mxu0 0
        %1251 = vmatprep.subr.bf16.mxu0 0
        %1252 = vmatpush1.bf16.msra.mxu0 0
        %1253 = vmatprep.subr.bf16.mxu0 0
        %1254 = vmatpush1.bf16.msra.mxu0 0
        %1255 = vmatprep.subr.bf16.mxu0 0
        %1256 = vmatpush1.bf16.msra.mxu0 0
        %1257 = vmatprep.subr.bf16.mxu0 0
        %1258 = vmatpush1.bf16.msra.mxu0 0
        %1259 = vmatprep.subr.bf16.mxu0 0
        %1260 = vmatpush1.bf16.msra.mxu0 0
        %1261 = vmatprep.subr.bf16.mxu0 0
        %1262 = vmatpush1.bf16.msra.mxu0 %v1243
        %1263 = vmatprep.subr.bf16.mxu0 0
        %1264 = vmatpush1.bf16.msra.mxu0 %v1242
        %1265 = vmatprep.subr.bf16.mxu0 0
        %1266 = vmatpush2.bf16.msra.mxu0 0
        %1267 = vmatprep.subr.bf16.mxu0 0
        %1268 = vmatpush2.bf16.msra.mxu0 0
        %1269 = vmatprep.subr.bf16.mxu0 0
        %1270 = vmatpush2.bf16.msra.mxu0 0
        %1271 = vmatprep.subr.bf16.mxu0 0
        %1272 = vmatpush2.bf16.msra.mxu0 0
        %1273 = vmatprep.subr.bf16.mxu0 0
        %1274 = vmatpush2.bf16.msra.mxu0 0
        %1275 = vmatprep.subr.bf16.mxu0 0
        %1276 = vmatpush2.bf16.msra.mxu0 0
        %1277 = vmatprep.subr.bf16.mxu0 0
        %1278 = vmatpush2.bf16.msra.mxu0 0
        %1279 = vmatprep.subr.bf16.mxu0 0
        %1280 = vmatpush2.bf16.msra.mxu0 0
        %1281 = vmatprep.mubr.bf16.mxu0 0
        %1282 = vmatmul.mubr.bf16.gmra.mxu0 %v1247
        %v1283 = vpop.f32.mrf.mxu0
        %v1284 = vadd.f32 %v1232, %v1283
        %v1285 = vpop.f32.mrf.mxu0
        %v1286 = vpop.f32.mrf.mxu0
        %v1287 = vpop.f32.mrf.mxu0
        %1288 = vdwg.mxu0
        %1289 = vst.msk [vmem:[%s553] sm:$0xff] %vm584, %v1284
        %s1290 = sand.u32 %s288, 1
        %s1291 = scalar_lea.sflag [#allocation5], %s1290
        %s1292 = sand.u32 %s288, 1
        %s1293 = smul.addr %s1292, 8
        %s1294 = scalar_lea.vmem [#allocation18], %s1293
        // Predicated region
        $region101: #{tpu_custom_call.1} parent=63 // pred_check
          %p1295 = pneg %p298
        $region102: #{tpu_custom_call.1} parent=63 // pred_check_branch
          %1297 = sbr.rel (%p1295) target = $region104
        $region103: #{tpu_custom_call.1} parent=63 // pred_region
          %s1299 = ssub.s32 128, 128
          %1300 = vsyncadd %s1291, %s1299
          %s1301 = smul.addr %s34, 128
          %s1302 = scalar_lea.hbm %s11, %s1301
          %s1304 = sshll.u32 %s1294, 4
          %s1305 = int_to_ptr.vmem [resolvable:$true] %s1304
          %1307 = dma.vmem_to_hbm [thread:$0]  %s1305, 128, %s1302, %s1291
        $region104: #{tpu_custom_call.1} parent=63 // pred_fallthru
          _
      $region64: #{tpu_custom_call.1} parent=5 // pred_fallthru
        _
      %p1308 = scmp.le.s32.totalorder 2, %s29
      // Predicated region
      $region105: #{tpu_custom_call.1} parent=5 // pred_check
        %p1309 = pneg %p1308
      $region106: #{tpu_custom_call.1} parent=5 // pred_check_branch
        %1311 = sbr.rel (%p1309) target = $region108
      $region107: #{tpu_custom_call.1} parent=5 // pred_region
        %s1312 = ssub.s32 %s29, 2
        // Predicated region
        $region109: #{tpu_custom_call.1} parent=107 // pred_check
          %p1313 = pneg %p304
        $region110: #{tpu_custom_call.1} parent=107 // pred_check_branch
          %1315 = sbr.rel (%p1313) target = $region112
        $region111: #{tpu_custom_call.1} parent=107 // pred_region
          %s1316 = sand.u32 %s289, 1
          %s1317 = scalar_lea.sflag [#allocation5], %s1316
          %s1318 = sand.u32 %s289, 1
          %s1319 = smul.addr %s1318, 8
          %s1320 = scalar_lea.vmem [#allocation18], %s1319
          %1321 = dma.done %s1317, 128
        $region112: #{tpu_custom_call.1} parent=107 // pred_fallthru
          _
      $region108: #{tpu_custom_call.1} parent=5 // pred_fallthru
        _
    $region6: #{tpu_custom_call.1} parent=1 // loop_footer
      %s33 = sadd.s32 1, %s29
    $region7: #{tpu_custom_call.1} parent=1 // loop_footer_branch
      %28 = sbr.rel target = $region3
    $region8: #{tpu_custom_call.1} parent=1 // loop_exit
      _
    %1322 = vsyncpa [#allocation4], 1
    %s1323 = scalar_lea.sflag [#allocation4], 1
    %1324 = vsyncpa %s1323, 1
    %1325 = vsyncpa [#allocation7], 1
    %s1326 = scalar_lea.sflag [#allocation7], 1
    %1327 = vsyncpa %s1326, 1
    %1328 = vsyncpa [#allocation10], 1
    %1329 = vsyncpa [#allocation13], 1
    %1330 = vsyncpa [#allocation16], 1
    %1331 = vsyncpa [#allocation5], 1
    %s1332 = scalar_lea.sflag [#allocation5], 1
    %1333 = vsyncpa %s1332, 1

</llo_original>
